<compile_context>
chip_gen: v6e
topology: v6e:2x2x1
jax: 0.10.0
libtpu: 0.0.40
codegen_flags: <defaults>
</compile_context>

<pallas_src>
import functools

import jax
import jax.numpy as jnp
from jax import lax
from jax.experimental import pallas as pl
from jax.experimental.pallas import tpu as pltpu


# -----------------------------------------------------------------------------
# Tiling helpers
# -----------------------------------------------------------------------------
def _round_up(x, m):
    return ((x + m - 1) // m) * m


def _pick_tile(dim, target, align):
    """Tile size: multiple of `align`, <= target (or the full aligned dim),
    preferring a divisor of the aligned dim to minimize zero-padding."""
    dim_a = _round_up(dim, align)
    if dim_a <= target:
        return dim_a
    for t in range(target, target // 2, -align):
        if dim_a % t == 0:
            return t
    return target


# -----------------------------------------------------------------------------
# Pallas kernel:  out = relu?( sum_i x_i @ w_i + b )
# -----------------------------------------------------------------------------
def _make_fused_matmul_kernel(n_ops, apply_relu):
    def kernel(*refs):
        xs = refs[:n_ops]
        ws = refs[n_ops:2 * n_ops]
        b_ref = refs[2 * n_ops]
        o_ref = refs[2 * n_ops + 1]
        acc_ref = refs[2 * n_ops + 2]

        @pl.when(pl.program_id(2) == 0)
        def _init():
            acc_ref[...] = jnp.zeros_like(acc_ref)

        for x_ref, w_ref in zip(xs, ws):
            acc_ref[...] += jnp.dot(x_ref[...], w_ref[...],
                                    preferred_element_type=jnp.float32)

        @pl.when(pl.program_id(2) == pl.num_programs(2) - 1)
        def _finalize():
            r = acc_ref[...] + b_ref[...]          # (1, tn) broadcasts over rows
            if apply_relu:
                r = jnp.maximum(r, 0.0)
            o_ref[...] = r.astype(o_ref.dtype)

    return kernel


def fused_matmul_bias(xs, ws, b, *, apply_relu=False, out_dtype=jnp.bfloat16,
                      tm_target=256, tn_target=512, tk_target=512):
    """out = relu?( sum_i xs[i] @ ws[i] + b ),  xs[i]:(M,K), ws[i]:(K,Nout), b:(Nout,).

    All operands share (M, K, Nout).  Tiled over a (M/tm, N/tn, K/tk) grid with an
    f32 VMEM accumulator; bf16 MXU operands; lane-dense padded output cropped here.
    """
    n_ops = len(xs)
    M, K = xs[0].shape
    Nout = ws[0].shape[1]
    for x, w in zip(xs, ws):
        assert x.shape == (M, K) and w.shape == (K, Nout)

    tm = min(tm_target, _round_up(M, 8))
    tn = _pick_tile(Nout, tn_target, 128)
    tk = _pick_tile(K, tk_target, 128)
    Mp, Kp, Np = _round_up(M, tm), _round_up(K, tk), _round_up(Nout, tn)

    def pad2(a, rows, cols):
        if a.shape == (rows, cols):
            return a
        return jnp.pad(a, ((0, rows - a.shape[0]), (0, cols - a.shape[1])))

    xs_p = [pad2(x.astype(jnp.bfloat16), Mp, Kp) for x in xs]
    ws_p = [pad2(w.astype(jnp.bfloat16), Kp, Np) for w in ws]
    b_p = pad2(b.reshape(1, Nout).astype(jnp.float32), 1, Np)

    grid = (Mp // tm, Np // tn, Kp // tk)
    x_spec = pl.BlockSpec((tm, tk), lambda i, j, k: (i, k))
    w_spec = pl.BlockSpec((tk, tn), lambda i, j, k: (k, j))
    b_spec = pl.BlockSpec((1, tn), lambda i, j, k: (0, j))
    o_spec = pl.BlockSpec((tm, tn), lambda i, j, k: (i, j))

    out_itemsize = jnp.dtype(out_dtype).itemsize
    cost = pl.CostEstimate(
        flops=int(2 * Mp * Kp * Np * n_ops),
        transcendentals=0,
        bytes_accessed=int(2 * n_ops * (Mp * Kp + Kp * Np) + 4 * Np
                           + out_itemsize * Mp * Np),
    )

    out = pl.pallas_call(
        _make_fused_matmul_kernel(n_ops, apply_relu),
        out_shape=jax.ShapeDtypeStruct((Mp, Np), out_dtype),
        grid=grid,
        in_specs=[x_spec] * n_ops + [w_spec] * n_ops + [b_spec],
        out_specs=o_spec,
        scratch_shapes=[pltpu.VMEM((tm, tn), jnp.float32)],
        compiler_params=pltpu.CompilerParams(
            dimension_semantics=("parallel", "parallel", "arbitrary"),
            vmem_limit_bytes=32 * 1024 * 1024,
        ),
        cost_estimate=cost,
    )(*xs_p, *ws_p, b_p)
    return out[:M, :Nout]


# -----------------------------------------------------------------------------
# Ops built on the Pallas matmul kernel
# -----------------------------------------------------------------------------
def conv_transpose2x2_s2(x_nhwc, w2d, b4):
    """PyTorch ConvTranspose2d(Cin, Cout, kernel=2, stride=2).
    w2d: pre-packed (Cin, 4*Cout) with columns ordered (kh, kw, co);
    b4:  bias tiled per (kh, kw, co) column."""
    N, H, W, Cin = x_nhwc.shape
    Cout = w2d.shape[1] // 4
    y2d = fused_matmul_bias([x_nhwc.reshape(N * H * W, Cin)], [w2d], b4,
                            apply_relu=False, out_dtype=jnp.bfloat16)
    y = y2d.reshape(N, H, W, 2, 2, Cout)
    # TODO(synk): fold this interleave into the kernel's output index_map.
    return jnp.transpose(y, (0, 1, 3, 2, 4, 5)).reshape(N, 2 * H, 2 * W, Cout)


def _im2col_3x3(x_nhwc):
    """(N,H,W,C) -> ((N*Ho*Wo, 9*C), (N,Ho,Wo)) with column order (di, dj, ci)."""
    # TODO(synk): replace with in-kernel shifted-window reads (tap axis in the K grid)
    #             to avoid the 9x HBM expansion of the activation.
    N, H, W, C = x_nhwc.shape
    Ho, Wo = H - 2, W - 2
    patches = jnp.concatenate(
        [x_nhwc[:, di:di + Ho, dj:dj + Wo, :] for di in range(3) for dj in range(3)],
        axis=-1)
    return patches.reshape(N * Ho * Wo, 9 * C), (N, Ho, Wo)


def center_crop(enc_nhwc, H, W):
    """torchvision.transforms.CenterCrop([H, W]) on an NHWC tensor."""
    _, He, We, _ = enc_nhwc.shape
    top = int(round((He - H) / 2.0))
    left = int(round((We - W) / 2.0))
    return enc_nhwc[:, top:top + H, left:left + W, :]


# -----------------------------------------------------------------------------
# Parameters: raw (PyTorch-layout) init + one-time packing for the kernels
# -----------------------------------------------------------------------------
def init_decoder_params(key, chs):
    params = []
    for i in range(len(chs) - 1):
        cin, cout = chs[i], chs[i + 1]
        key, k0, k1, k2, k3, k4, k5 = jax.random.split(key, 7)
        params.append(dict(
            up_w=jax.random.normal(k0, (cin, cout, 2, 2), jnp.float32) / jnp.sqrt(4.0 * cin),
            up_b=jax.random.normal(k1, (cout,), jnp.float32) * 0.01,
            c1_w=jax.random.normal(k2, (cout, cin, 3, 3), jnp.float32) / jnp.sqrt(9.0 * cin),
            c1_b=jax.random.normal(k3, (cout,), jnp.float32) * 0.01,
            c2_w=jax.random.normal(k4, (cout, cout, 3, 3), jnp.float32) / jnp.sqrt(9.0 * cout),
            c2_b=jax.random.normal(k5, (cout,), jnp.float32) * 0.01,
        ))
    return params


def prepare_params(raw_params):
    """Pre-pack weights once (matmul layouts + bf16 cast), outside the forward."""
    packed = []
    for p in raw_params:
        cin, cout = p['up_w'].shape[0], p['up_w'].shape[1]
        up_w2d = jnp.transpose(p['up_w'], (0, 2, 3, 1)).reshape(cin, 4 * cout)
        # conv1 weight split along input channels: first `cout` rows multiply the
        # up-sampled x, the rest multiply the cropped encoder feature -> the kernel
        # can do split-K accumulation instead of an HBM channel concat.
        c1_wx = jnp.transpose(p['c1_w'][:, :cout], (2, 3, 1, 0)).reshape(9 * cout, cout)
        c1_we = jnp.transpose(p['c1_w'][:, cout:], (2, 3, 1, 0)).reshape(9 * cout, cout)
        c2_w = jnp.transpose(p['c2_w'], (2, 3, 1, 0)).reshape(9 * cout, cout)
        packed.append(dict(
            up_w=up_w2d.astype(jnp.bfloat16),
            up_b=jnp.tile(p['up_b'], 4).astype(jnp.float32),
            c1_wx=c1_wx.astype(jnp.bfloat16),
            c1_we=c1_we.astype(jnp.bfloat16),
            c1_b=p['c1_b'].astype(jnp.float32),
            c2_w=c2_w.astype(jnp.bfloat16),
            c2_b=p['c2_b'].astype(jnp.float32),
        ))
    return packed


# -----------------------------------------------------------------------------
# Decoder forward (Pallas path)
# -----------------------------------------------------------------------------
def decoder_forward(packed_params, x_nchw, encoder_features_nchw):
    x = jnp.transpose(x_nchw, (0, 2, 3, 1)).astype(jnp.bfloat16)      # NCHW -> NHWC
    n_stages = len(packed_params)
    for i, p in enumerate(packed_params):
        x = conv_transpose2x2_s2(x, p['up_w'], p['up_b'])             # upconv
        enc = jnp.transpose(encoder_features_nchw[i], (0, 2, 3, 1)).astype(jnp.bfloat16)
        enc = center_crop(enc, x.shape[1], x.shape[2])                # crop
        # Block.conv1 + ReLU on cat([x, enc], channels) without materializing the cat:
        px, _ = _im2col_3x3(x)
        pe, (n_, ho, wo) = _im2col_3x3(enc)
        y = fused_matmul_bias([px, pe], [p['c1_wx'], p['c1_we']], p['c1_b'],
                              apply_relu=True, out_dtype=jnp.bfloat16)
        x = y.reshape(n_, ho, wo, -1)
        # Block.conv2 (no ReLU); last stage emits f32
        p2, (n_, ho, wo) = _im2col_3x3(x)
        out_dtype = jnp.float32 if i == n_stages - 1 else jnp.bfloat16
        y = fused_matmul_bias([p2], [p['c2_w']], p['c2_b'],
                              apply_relu=False, out_dtype=out_dtype)
        x = y.reshape(n_, ho, wo, -1)
    return jnp.transpose(x, (0, 3, 1, 2))                             # NHWC -> NCHW


# -----------------------------------------------------------------------------
# Pure-JAX f32 reference (no Pallas) for numerical verification
# -----------------------------------------------------------------------------
def ref_forward(params, x_nchw, encoder_features_nchw):
    x = jnp.transpose(x_nchw, (0, 2, 3, 1))
    for i, p in enumerate(params):
        r = jnp.einsum('nhwi,iokl->nhwklo', x, p['up_w'])
        N, H, W, _, _, Cout = r.shape
        x = jnp.transpose(r, (0, 1, 3, 2, 4, 5)).reshape(N, 2 * H, 2 * W, Cout) + p['up_b']
        enc = jnp.transpose(encoder_features_nchw[i], (0, 2, 3, 1))
        enc = center_crop(enc, x.shape[1], x.shape[2])
        x = jnp.concatenate([x, enc], axis=-1)
        for w, b, relu in ((p['c1_w'], p['c1_b'], True), (p['c2_w'], p['c2_b'], False)):
            k = jnp.transpose(w, (2, 3, 1, 0))                        # OIHW -> HWIO
            x = lax.conv_general_dilated(
                x, k, (1, 1), 'VALID',
                dimension_numbers=('NHWC', 'HWIO', 'NHWC')) + b
            if relu:
                x = jnp.maximum(x, 0.0)
    return jnp.transpose(x, (0, 3, 1, 2))


# -----------------------------------------------------------------------------
if __name__ == "__main__":
    key = jax.random.PRNGKey(0)
    chs = (32, 16, 8)          # small stand-in for (1024, 512, 256, 128, 64); chs[i] == 2*chs[i+1]
    N = 2
    kx, ke0, ke1, kp = jax.random.split(key, 4)

    x = jax.random.normal(kx, (N, chs[0], 4, 4), jnp.float32)         # bottleneck input
    encoder_features = [
        jax.random.normal(ke0, (N, chs[1], 12, 12), jnp.float32),     # skip for stage 0
        jax.random.normal(ke1, (N, chs[2], 12, 12), jnp.float32),     # skip for stage 1
    ]
    raw_params = init_decoder_params(kp, chs)
    packed_params = prepare_params(raw_params)

    fwd = jax.jit(decoder_forward)
    out = jax.block_until_ready(fwd(packed_params, x, encoder_features))

    ref = ref_forward(raw_params, x, encoder_features)
    assert out.shape == (N, chs[-1], 4, 4), out.shape
    err = float(jnp.max(jnp.abs(out.astype(jnp.float32) - ref)))
    scale = float(jnp.max(jnp.abs(ref))) + 1e-6
    # bf16 MXU operands / bf16 intermediate activations with f32 accumulation:
    # verify against the f32 reference with a bf16-appropriate tolerance.
    assert err <= 0.05 * scale + 1e-3, (err, scale)

    print("KERNEL_OK")
</pallas_src>

<mosaic_0001>
module attributes {stable_mosaic.version = 11 : i64} {
  func.func @kernel(%arg0: i32, %arg1: i32, %arg2: i32, %arg3: memref<32x128xbf16, #tpu.memory_space<vmem>>, %arg4: memref<128x128xbf16, #tpu.memory_space<vmem>>, %arg5: memref<1x128xf32, #tpu.memory_space<vmem>>, %arg6: memref<32x128xbf16, #tpu.memory_space<vmem>>, %arg7: memref<32x128xf32, #tpu.memory_space<vmem>>) attributes {dimension_semantics = [#tpu.dimension_semantics<parallel>, #tpu.dimension_semantics<parallel>, #tpu.dimension_semantics<arbitrary>], iteration_bounds = array<i64: 1, 1, 1>, scalar_prefetch = 0 : i64, scratch_operands = 1 : i64, tpu.core_type = #tpu.core_type<tc>, window_params = [{transform_indices = @transform_0, window_bounds = array<i64: 32, 128>}, {transform_indices = @transform_1, window_bounds = array<i64: 128, 128>}, {transform_indices = @transform_2, window_bounds = array<i64: 1, 128>}, {transform_indices = @transform_3, window_bounds = array<i64: 32, 128>}]} {
    %c0_i32 = arith.constant 0 : i32
    %0 = arith.cmpi eq, %arg2, %c0_i32 : i32
    %1 = arith.extui %0 : i1 to i32
    %c0_i32_0 = arith.constant 0 : i32
    %2 = arith.cmpi ne, %1, %c0_i32_0 : i32
    scf.if %2 {
      %cst_10 = arith.constant 0.000000e+00 : f32
      %12 = vector.broadcast %cst_10 : f32 to vector<32x128xf32>
      %c0_11 = arith.constant 0 : index
      %c0_12 = arith.constant 0 : index
      %13 = vector.load %arg7[%c0_11, %c0_12] : memref<32x128xf32, #tpu.memory_space<vmem>>, vector<32x128xf32>
      tpu.vector_store %arg7[%c0_11, %c0_12], %12 {strides = array<i32>} : memref<32x128xf32, #tpu.memory_space<vmem>>, vector<32x128xf32>,
    } else {
    }
    %c0 = arith.constant 0 : index
    %c0_1 = arith.constant 0 : index
    %3 = vector.load %arg7[%c0, %c0_1] : memref<32x128xf32, #tpu.memory_space<vmem>>, vector<32x128xf32>
    %c0_2 = arith.constant 0 : index
    %c0_3 = arith.constant 0 : index
    %4 = vector.load %arg3[%c0_2, %c0_3] : memref<32x128xbf16, #tpu.memory_space<vmem>>, vector<32x128xbf16>
    %c0_4 = arith.constant 0 : index
    %c0_5 = arith.constant 0 : index
    %5 = vector.load %arg4[%c0_4, %c0_5] : memref<128x128xbf16, #tpu.memory_space<vmem>>, vector<128x128xbf16>
    %cst = arith.constant dense<0.000000e+00> : vector<32x128xf32>
    %6 = tpu.matmul %4, %5, %cst {dimension_numbers = #tpu.dot_dimension_numbers<[1], [0], [0], [1], [0, 0, 1, 1], [], []>} : vector<32x128xbf16>, vector<128x128xbf16>, vector<32x128xf32> -> vector<32x128xf32>
    %7 = arith.addf %3, %6 : vector<32x128xf32>
    %c0_6 = arith.constant 0 : index
    %c0_7 = arith.constant 0 : index
    %8 = vector.load %arg7[%c0_6, %c0_7] : memref<32x128xf32, #tpu.memory_space<vmem>>, vector<32x128xf32>
    tpu.vector_store %arg7[%c0_6, %c0_7], %7 {strides = array<i32>} : memref<32x128xf32, #tpu.memory_space<vmem>>, vector<32x128xf32>,
    %c0_i32_8 = arith.constant 0 : i32
    %9 = arith.cmpi eq, %arg2, %c0_i32_8 : i32
    %10 = arith.extui %9 : i1 to i32
    %c0_i32_9 = arith.constant 0 : i32
    %11 = arith.cmpi ne, %10, %c0_i32_9 : i32
    scf.if %11 {
      %c0_10 = arith.constant 0 : index
      %c0_11 = arith.constant 0 : index
      %12 = vector.load %arg7[%c0_10, %c0_11] : memref<32x128xf32, #tpu.memory_space<vmem>>, vector<32x128xf32>
      %c0_12 = arith.constant 0 : index
      %c0_13 = arith.constant 0 : index
      %13 = vector.load %arg5[%c0_12, %c0_13] : memref<1x128xf32, #tpu.memory_space<vmem>>, vector<1x128xf32>
      %14 = vector.broadcast %13 : vector<1x128xf32> to vector<32x128xf32>
      %15 = arith.addf %12, %14 : vector<32x128xf32>
      %16 = arith.truncf %15 : vector<32x128xf32> to vector<32x128xbf16>
      %c0_14 = arith.constant 0 : index
      %c0_15 = arith.constant 0 : index
      %17 = vector.load %arg6[%c0_14, %c0_15] : memref<32x128xbf16, #tpu.memory_space<vmem>>, vector<32x128xbf16>
      tpu.vector_store %arg6[%c0_14, %c0_15], %16 {strides = array<i32>} : memref<32x128xbf16, #tpu.memory_space<vmem>>, vector<32x128xbf16>,
    } else {
    }
    return
  }
  func.func @transform_0(%arg0: i32, %arg1: i32, %arg2: i32) -> (i32, i32) {
    %c0_i32 = arith.constant 0 : i32
    return %arg0, %arg2 : i32, i32
  }
  func.func @transform_1(%arg0: i32, %arg1: i32, %arg2: i32) -> (i32, i32) {
    %c0_i32 = arith.constant 0 : i32
    return %arg2, %arg1 : i32, i32
  }
  func.func @transform_2(%arg0: i32, %arg1: i32, %arg2: i32) -> (i32, i32) {
    %c0_i32 = arith.constant 0 : i32
    %c0_i32_0 = arith.constant 0 : i32
    return %c0_i32, %arg1 : i32, i32
  }
  func.func @transform_3(%arg0: i32, %arg1: i32, %arg2: i32) -> (i32, i32) {
    %c0_i32 = arith.constant 0 : i32
    return %arg0, %arg1 : i32, i32
  }
}

module attributes {stable_mosaic.version = 11 : i64} {
  func.func @kernel(%arg0: i32, %arg1: i32, %arg2: i32, %arg3: memref<72x256xbf16, #tpu.memory_space<vmem>>, %arg4: memref<72x256xbf16, #tpu.memory_space<vmem>>, %arg5: memref<256x128xbf16, #tpu.memory_space<vmem>>, %arg6: memref<256x128xbf16, #tpu.memory_space<vmem>>, %arg7: memref<1x128xf32, #tpu.memory_space<vmem>>, %arg8: memref<72x128xbf16, #tpu.memory_space<vmem>>, %arg9: memref<72x128xf32, #tpu.memory_space<vmem>>) attributes {dimension_semantics = [#tpu.dimension_semantics<parallel>, #tpu.dimension_semantics<parallel>, #tpu.dimension_semantics<arbitrary>], iteration_bounds = array<i64: 1, 1, 1>, scalar_prefetch = 0 : i64, scratch_operands = 1 : i64, tpu.core_type = #tpu.core_type<tc>, window_params = [{transform_indices = @transform_0, window_bounds = array<i64: 72, 256>}, {transform_indices = @transform_1, window_bounds = array<i64: 72, 256>}, {transform_indices = @transform_2, window_bounds = array<i64: 256, 128>}, {transform_indices = @transform_3, window_bounds = array<i64: 256, 128>}, {transform_indices = @transform_4, window_bounds = array<i64: 1, 128>}, {transform_indices = @transform_5, window_bounds = array<i64: 72, 128>}]} {
    %c0_i32 = arith.constant 0 : i32
    %0 = arith.cmpi eq, %arg2, %c0_i32 : i32
    %1 = arith.extui %0 : i1 to i32
    %c0_i32_0 = arith.constant 0 : i32
    %2 = arith.cmpi ne, %1, %c0_i32_0 : i32
    scf.if %2 {
      %cst_19 = arith.constant 0.000000e+00 : f32
      %18 = vector.broadcast %cst_19 : f32 to vector<72x128xf32>
      %c0_20 = arith.constant 0 : index
      %c0_21 = arith.constant 0 : index
      %19 = vector.load %arg9[%c0_20, %c0_21] : memref<72x128xf32, #tpu.memory_space<vmem>>, vector<72x128xf32>
      tpu.vector_store %arg9[%c0_20, %c0_21], %18 {strides = array<i32>} : memref<72x128xf32, #tpu.memory_space<vmem>>, vector<72x128xf32>,
    } else {
    }
    %c0 = arith.constant 0 : index
    %c0_1 = arith.constant 0 : index
    %3 = vector.load %arg9[%c0, %c0_1] : memref<72x128xf32, #tpu.memory_space<vmem>>, vector<72x128xf32>
    %c0_2 = arith.constant 0 : index
    %c0_3 = arith.constant 0 : index
    %4 = vector.load %arg3[%c0_2, %c0_3] : memref<72x256xbf16, #tpu.memory_space<vmem>>, vector<72x256xbf16>
    %c0_4 = arith.constant 0 : index
    %c0_5 = arith.constant 0 : index
    %5 = vector.load %arg5[%c0_4, %c0_5] : memref<256x128xbf16, #tpu.memory_space<vmem>>, vector<256x128xbf16>
    %cst = arith.constant dense<0.000000e+00> : vector<72x128xf32>
    %6 = tpu.matmul %4, %5, %cst {dimension_numbers = #tpu.dot_dimension_numbers<[1], [0], [0], [1], [0, 0, 1, 1], [], []>} : vector<72x256xbf16>, vector<256x128xbf16>, vector<72x128xf32> -> vector<72x128xf32>
    %7 = arith.addf %3, %6 : vector<72x128xf32>
    %c0_6 = arith.constant 0 : index
    %c0_7 = arith.constant 0 : index
    %8 = vector.load %arg9[%c0_6, %c0_7] : memref<72x128xf32, #tpu.memory_space<vmem>>, vector<72x128xf32>
    tpu.vector_store %arg9[%c0_6, %c0_7], %7 {strides = array<i32>} : memref<72x128xf32, #tpu.memory_space<vmem>>, vector<72x128xf32>,
    %c0_8 = arith.constant 0 : index
    %c0_9 = arith.constant 0 : index
    %9 = vector.load %arg9[%c0_8, %c0_9] : memref<72x128xf32, #tpu.memory_space<vmem>>, vector<72x128xf32>
    %c0_10 = arith.constant 0 : index
    %c0_11 = arith.constant 0 : index
    %10 = vector.load %arg4[%c0_10, %c0_11] : memref<72x256xbf16, #tpu.memory_space<vmem>>, vector<72x256xbf16>
    %c0_12 = arith.constant 0 : index
    %c0_13 = arith.constant 0 : index
    %11 = vector.load %arg6[%c0_12, %c0_13] : memref<256x128xbf16, #tpu.memory_space<vmem>>, vector<256x128xbf16>
    %cst_14 = arith.constant dense<0.000000e+00> : vector<72x128xf32>
    %12 = tpu.matmul %10, %11, %cst_14 {dimension_numbers = #tpu.dot_dimension_numbers<[1], [0], [0], [1], [0, 0, 1, 1], [], []>} : vector<72x256xbf16>, vector<256x128xbf16>, vector<72x128xf32> -> vector<72x128xf32>
    %13 = arith.addf %9, %12 : vector<72x128xf32>
    %c0_15 = arith.constant 0 : index
    %c0_16 = arith.constant 0 : index
    %14 = vector.load %arg9[%c0_15, %c0_16] : memref<72x128xf32, #tpu.memory_space<vmem>>, vector<72x128xf32>
    tpu.vector_store %arg9[%c0_15, %c0_16], %13 {strides = array<i32>} : memref<72x128xf32, #tpu.memory_space<vmem>>, vector<72x128xf32>,
    %c0_i32_17 = arith.constant 0 : i32
    %15 = arith.cmpi eq, %arg2, %c0_i32_17 : i32
    %16 = arith.extui %15 : i1 to i32
    %c0_i32_18 = arith.constant 0 : i32
    %17 = arith.cmpi ne, %16, %c0_i32_18 : i32
    scf.if %17 {
      %c0_19 = arith.constant 0 : index
      %c0_20 = arith.constant 0 : index
      %18 = vector.load %arg9[%c0_19, %c0_20] : memref<72x128xf32, #tpu.memory_space<vmem>>, vector<72x128xf32>
      %c0_21 = arith.constant 0 : index
      %c0_22 = arith.constant 0 : index
      %19 = vector.load %arg7[%c0_21, %c0_22] : memref<1x128xf32, #tpu.memory_space<vmem>>, vector<1x128xf32>
      %20 = vector.broadcast %19 : vector<1x128xf32> to vector<72x128xf32>
      %21 = arith.addf %18, %20 : vector<72x128xf32>
      %cst_23 = arith.constant 0.000000e+00 : f32
      %22 = vector.broadcast %cst_23 : f32 to vector<72x128xf32>
      %23 = arith.maximumf %21, %22 : vector<72x128xf32>
      %24 = arith.truncf %23 : vector<72x128xf32> to vector<72x128xbf16>
      %c0_24 = arith.constant 0 : index
      %c0_25 = arith.constant 0 : index
      %25 = vector.load %arg8[%c0_24, %c0_25] : memref<72x128xbf16, #tpu.memory_space<vmem>>, vector<72x128xbf16>
      tpu.vector_store %arg8[%c0_24, %c0_25], %24 {strides = array<i32>} : memref<72x128xbf16, #tpu.memory_space<vmem>>, vector<72x128xbf16>,
    } else {
    }
    return
  }
  func.func @transform_0(%arg0: i32, %arg1: i32, %arg2: i32) -> (i32, i32) {
    %c0_i32 = arith.constant 0 : i32
    return %arg0, %arg2 : i32, i32
  }
  func.func @transform_1(%arg0: i32, %arg1: i32, %arg2: i32) -> (i32, i32) {
    %c0_i32 = arith.constant 0 : i32
    return %arg0, %arg2 : i32, i32
  }
  func.func @transform_2(%arg0: i32, %arg1: i32, %arg2: i32) -> (i32, i32) {
    %c0_i32 = arith.constant 0 : i32
    return %arg2, %arg1 : i32, i32
  }
  func.func @transform_3(%arg0: i32, %arg1: i32, %arg2: i32) -> (i32, i32) {
    %c0_i32 = arith.constant 0 : i32
    return %arg2, %arg1 : i32, i32
  }
  func.func @transform_4(%arg0: i32, %arg1: i32, %arg2: i32) -> (i32, i32) {
    %c0_i32 = arith.constant 0 : i32
    %c0_i32_0 = arith.constant 0 : i32
    return %c0_i32, %arg1 : i32, i32
  }
  func.func @transform_5(%arg0: i32, %arg1: i32, %arg2: i32) -> (i32, i32) {
    %c0_i32 = arith.constant 0 : i32
    return %arg0, %arg1 : i32, i32
  }
}

module attributes {stable_mosaic.version = 11 : i64} {
  func.func @kernel(%arg0: i32, %arg1: i32, %arg2: i32, %arg3: memref<32x256xbf16, #tpu.memory_space<vmem>>, %arg4: memref<256x128xbf16, #tpu.memory_space<vmem>>, %arg5: memref<1x128xf32, #tpu.memory_space<vmem>>, %arg6: memref<32x128xbf16, #tpu.memory_space<vmem>>, %arg7: memref<32x128xf32, #tpu.memory_space<vmem>>) attributes {dimension_semantics = [#tpu.dimension_semantics<parallel>, #tpu.dimension_semantics<parallel>, #tpu.dimension_semantics<arbitrary>], iteration_bounds = array<i64: 1, 1, 1>, scalar_prefetch = 0 : i64, scratch_operands = 1 : i64, tpu.core_type = #tpu.core_type<tc>, window_params = [{transform_indices = @transform_0, window_bounds = array<i64: 32, 256>}, {transform_indices = @transform_1, window_bounds = array<i64: 256, 128>}, {transform_indices = @transform_2, window_bounds = array<i64: 1, 128>}, {transform_indices = @transform_3, window_bounds = array<i64: 32, 128>}]} {
    %c0_i32 = arith.constant 0 : i32
    %0 = arith.cmpi eq, %arg2, %c0_i32 : i32
    %1 = arith.extui %0 : i1 to i32
    %c0_i32_0 = arith.constant 0 : i32
    %2 = arith.cmpi ne, %1, %c0_i32_0 : i32
    scf.if %2 {
      %cst_10 = arith.constant 0.000000e+00 : f32
      %12 = vector.broadcast %cst_10 : f32 to vector<32x128xf32>
      %c0_11 = arith.constant 0 : index
      %c0_12 = arith.constant 0 : index
      %13 = vector.load %arg7[%c0_11, %c0_12] : memref<32x128xf32, #tpu.memory_space<vmem>>, vector<32x128xf32>
      tpu.vector_store %arg7[%c0_11, %c0_12], %12 {strides = array<i32>} : memref<32x128xf32, #tpu.memory_space<vmem>>, vector<32x128xf32>,
    } else {
    }
    %c0 = arith.constant 0 : index
    %c0_1 = arith.constant 0 : index
    %3 = vector.load %arg7[%c0, %c0_1] : memref<32x128xf32, #tpu.memory_space<vmem>>, vector<32x128xf32>
    %c0_2 = arith.constant 0 : index
    %c0_3 = arith.constant 0 : index
    %4 = vector.load %arg3[%c0_2, %c0_3] : memref<32x256xbf16, #tpu.memory_space<vmem>>, vector<32x256xbf16>
    %c0_4 = arith.constant 0 : index
    %c0_5 = arith.constant 0 : index
    %5 = vector.load %arg4[%c0_4, %c0_5] : memref<256x128xbf16, #tpu.memory_space<vmem>>, vector<256x128xbf16>
    %cst = arith.constant dense<0.000000e+00> : vector<32x128xf32>
    %6 = tpu.matmul %4, %5, %cst {dimension_numbers = #tpu.dot_dimension_numbers<[1], [0], [0], [1], [0, 0, 1, 1], [], []>} : vector<32x256xbf16>, vector<256x128xbf16>, vector<32x128xf32> -> vector<32x128xf32>
    %7 = arith.addf %3, %6 : vector<32x128xf32>
    %c0_6 = arith.constant 0 : index
    %c0_7 = arith.constant 0 : index
    %8 = vector.load %arg7[%c0_6, %c0_7] : memref<32x128xf32, #tpu.memory_space<vmem>>, vector<32x128xf32>
    tpu.vector_store %arg7[%c0_6, %c0_7], %7 {strides = array<i32>} : memref<32x128xf32, #tpu.memory_space<vmem>>, vector<32x128xf32>,
    %c0_i32_8 = arith.constant 0 : i32
    %9 = arith.cmpi eq, %arg2, %c0_i32_8 : i32
    %10 = arith.extui %9 : i1 to i32
    %c0_i32_9 = arith.constant 0 : i32
    %11 = arith.cmpi ne, %10, %c0_i32_9 : i32
    scf.if %11 {
      %c0_10 = arith.constant 0 : index
      %c0_11 = arith.constant 0 : index
      %12 = vector.load %arg7[%c0_10, %c0_11] : memref<32x128xf32, #tpu.memory_space<vmem>>, vector<32x128xf32>
      %c0_12 = arith.constant 0 : index
      %c0_13 = arith.constant 0 : index
      %13 = vector.load %arg5[%c0_12, %c0_13] : memref<1x128xf32, #tpu.memory_space<vmem>>, vector<1x128xf32>
      %14 = vector.broadcast %13 : vector<1x128xf32> to vector<32x128xf32>
      %15 = arith.addf %12, %14 : vector<32x128xf32>
      %16 = arith.truncf %15 : vector<32x128xf32> to vector<32x128xbf16>
      %c0_14 = arith.constant 0 : index
      %c0_15 = arith.constant 0 : index
      %17 = vector.load %arg6[%c0_14, %c0_15] : memref<32x128xbf16, #tpu.memory_space<vmem>>, vector<32x128xbf16>
      tpu.vector_store %arg6[%c0_14, %c0_15], %16 {strides = array<i32>} : memref<32x128xbf16, #tpu.memory_space<vmem>>, vector<32x128xbf16>,
    } else {
    }
    return
  }
  func.func @transform_0(%arg0: i32, %arg1: i32, %arg2: i32) -> (i32, i32) {
    %c0_i32 = arith.constant 0 : i32
    return %arg0, %arg2 : i32, i32
  }
  func.func @transform_1(%arg0: i32, %arg1: i32, %arg2: i32) -> (i32, i32) {
    %c0_i32 = arith.constant 0 : i32
    return %arg2, %arg1 : i32, i32
  }
  func.func @transform_2(%arg0: i32, %arg1: i32, %arg2: i32) -> (i32, i32) {
    %c0_i32 = arith.constant 0 : i32
    %c0_i32_0 = arith.constant 0 : i32
    return %c0_i32, %arg1 : i32, i32
  }
  func.func @transform_3(%arg0: i32, %arg1: i32, %arg2: i32) -> (i32, i32) {
    %c0_i32 = arith.constant 0 : i32
    return %arg0, %arg1 : i32, i32
  }
}

module attributes {stable_mosaic.version = 11 : i64} {
  func.func @kernel(%arg0: i32, %arg1: i32, %arg2: i32, %arg3: memref<72x128xbf16, #tpu.memory_space<vmem>>, %arg4: memref<72x128xbf16, #tpu.memory_space<vmem>>, %arg5: memref<128x128xbf16, #tpu.memory_space<vmem>>, %arg6: memref<128x128xbf16, #tpu.memory_space<vmem>>, %arg7: memref<1x128xf32, #tpu.memory_space<vmem>>, %arg8: memref<72x128xbf16, #tpu.memory_space<vmem>>, %arg9: memref<72x128xf32, #tpu.memory_space<vmem>>) attributes {dimension_semantics = [#tpu.dimension_semantics<parallel>, #tpu.dimension_semantics<parallel>, #tpu.dimension_semantics<arbitrary>], iteration_bounds = array<i64: 1, 1, 1>, scalar_prefetch = 0 : i64, scratch_operands = 1 : i64, tpu.core_type = #tpu.core_type<tc>, window_params = [{transform_indices = @transform_0, window_bounds = array<i64: 72, 128>}, {transform_indices = @transform_1, window_bounds = array<i64: 72, 128>}, {transform_indices = @transform_2, window_bounds = array<i64: 128, 128>}, {transform_indices = @transform_3, window_bounds = array<i64: 128, 128>}, {transform_indices = @transform_4, window_bounds = array<i64: 1, 128>}, {transform_indices = @transform_5, window_bounds = array<i64: 72, 128>}]} {
    %c0_i32 = arith.constant 0 : i32
    %0 = arith.cmpi eq, %arg2, %c0_i32 : i32
    %1 = arith.extui %0 : i1 to i32
    %c0_i32_0 = arith.constant 0 : i32
    %2 = arith.cmpi ne, %1, %c0_i32_0 : i32
    scf.if %2 {
      %cst_19 = arith.constant 0.000000e+00 : f32
      %18 = vector.broadcast %cst_19 : f32 to vector<72x128xf32>
      %c0_20 = arith.constant 0 : index
      %c0_21 = arith.constant 0 : index
      %19 = vector.load %arg9[%c0_20, %c0_21] : memref<72x128xf32, #tpu.memory_space<vmem>>, vector<72x128xf32>
      tpu.vector_store %arg9[%c0_20, %c0_21], %18 {strides = array<i32>} : memref<72x128xf32, #tpu.memory_space<vmem>>, vector<72x128xf32>,
    } else {
    }
    %c0 = arith.constant 0 : index
    %c0_1 = arith.constant 0 : index
    %3 = vector.load %arg9[%c0, %c0_1] : memref<72x128xf32, #tpu.memory_space<vmem>>, vector<72x128xf32>
    %c0_2 = arith.constant 0 : index
    %c0_3 = arith.constant 0 : index
    %4 = vector.load %arg3[%c0_2, %c0_3] : memref<72x128xbf16, #tpu.memory_space<vmem>>, vector<72x128xbf16>
    %c0_4 = arith.constant 0 : index
    %c0_5 = arith.constant 0 : index
    %5 = vector.load %arg5[%c0_4, %c0_5] : memref<128x128xbf16, #tpu.memory_space<vmem>>, vector<128x128xbf16>
    %cst = arith.constant dense<0.000000e+00> : vector<72x128xf32>
    %6 = tpu.matmul %4, %5, %cst {dimension_numbers = #tpu.dot_dimension_numbers<[1], [0], [0], [1], [0, 0, 1, 1], [], []>} : vector<72x128xbf16>, vector<128x128xbf16>, vector<72x128xf32> -> vector<72x128xf32>
    %7 = arith.addf %3, %6 : vector<72x128xf32>
    %c0_6 = arith.constant 0 : index
    %c0_7 = arith.constant 0 : index
    %8 = vector.load %arg9[%c0_6, %c0_7] : memref<72x128xf32, #tpu.memory_space<vmem>>, vector<72x128xf32>
    tpu.vector_store %arg9[%c0_6, %c0_7], %7 {strides = array<i32>} : memref<72x128xf32, #tpu.memory_space<vmem>>, vector<72x128xf32>,
    %c0_8 = arith.constant 0 : index
    %c0_9 = arith.constant 0 : index
    %9 = vector.load %arg9[%c0_8, %c0_9] : memref<72x128xf32, #tpu.memory_space<vmem>>, vector<72x128xf32>
    %c0_10 = arith.constant 0 : index
    %c0_11 = arith.constant 0 : index
    %10 = vector.load %arg4[%c0_10, %c0_11] : memref<72x128xbf16, #tpu.memory_space<vmem>>, vector<72x128xbf16>
    %c0_12 = arith.constant 0 : index
    %c0_13 = arith.constant 0 : index
    %11 = vector.load %arg6[%c0_12, %c0_13] : memref<128x128xbf16, #tpu.memory_space<vmem>>, vector<128x128xbf16>
    %cst_14 = arith.constant dense<0.000000e+00> : vector<72x128xf32>
    %12 = tpu.matmul %10, %11, %cst_14 {dimension_numbers = #tpu.dot_dimension_numbers<[1], [0], [0], [1], [0, 0, 1, 1], [], []>} : vector<72x128xbf16>, vector<128x128xbf16>, vector<72x128xf32> -> vector<72x128xf32>
    %13 = arith.addf %9, %12 : vector<72x128xf32>
    %c0_15 = arith.constant 0 : index
    %c0_16 = arith.constant 0 : index
    %14 = vector.load %arg9[%c0_15, %c0_16] : memref<72x128xf32, #tpu.memory_space<vmem>>, vector<72x128xf32>
    tpu.vector_store %arg9[%c0_15, %c0_16], %13 {strides = array<i32>} : memref<72x128xf32, #tpu.memory_space<vmem>>, vector<72x128xf32>,
    %c0_i32_17 = arith.constant 0 : i32
    %15 = arith.cmpi eq, %arg2, %c0_i32_17 : i32
    %16 = arith.extui %15 : i1 to i32
    %c0_i32_18 = arith.constant 0 : i32
    %17 = arith.cmpi ne, %16, %c0_i32_18 : i32
    scf.if %17 {
      %c0_19 = arith.constant 0 : index
      %c0_20 = arith.constant 0 : index
      %18 = vector.load %arg9[%c0_19, %c0_20] : memref<72x128xf32, #tpu.memory_space<vmem>>, vector<72x128xf32>
      %c0_21 = arith.constant 0 : index
      %c0_22 = arith.constant 0 : index
      %19 = vector.load %arg7[%c0_21, %c0_22] : memref<1x128xf32, #tpu.memory_space<vmem>>, vector<1x128xf32>
      %20 = vector.broadcast %19 : vector<1x128xf32> to vector<72x128xf32>
      %21 = arith.addf %18, %20 : vector<72x128xf32>
      %cst_23 = arith.constant 0.000000e+00 : f32
      %22 = vector.broadcast %cst_23 : f32 to vector<72x128xf32>
      %23 = arith.maximumf %21, %22 : vector<72x128xf32>
      %24 = arith.truncf %23 : vector<72x128xf32> to vector<72x128xbf16>
      %c0_24 = arith.constant 0 : index
      %c0_25 = arith.constant 0 : index
      %25 = vector.load %arg8[%c0_24, %c0_25] : memref<72x128xbf16, #tpu.memory_space<vmem>>, vector<72x128xbf16>
      tpu.vector_store %arg8[%c0_24, %c0_25], %24 {strides = array<i32>} : memref<72x128xbf16, #tpu.memory_space<vmem>>, vector<72x128xbf16>,
    } else {
    }
    return
  }
  func.func @transform_0(%arg0: i32, %arg1: i32, %arg2: i32) -> (i32, i32) {
    %c0_i32 = arith.constant 0 : i32
    return %arg0, %arg2 : i32, i32
  }
  func.func @transform_1(%arg0: i32, %arg1: i32, %arg2: i32) -> (i32, i32) {
    %c0_i32 = arith.constant 0 : i32
    return %arg0, %arg2 : i32, i32
  }
  func.func @transform_2(%arg0: i32, %arg1: i32, %arg2: i32) -> (i32, i32) {
    %c0_i32 = arith.constant 0 : i32
    return %arg2, %arg1 : i32, i32
  }
  func.func @transform_3(%arg0: i32, %arg1: i32, %arg2: i32) -> (i32, i32) {
    %c0_i32 = arith.constant 0 : i32
    return %arg2, %arg1 : i32, i32
  }
  func.func @transform_4(%arg0: i32, %arg1: i32, %arg2: i32) -> (i32, i32) {
    %c0_i32 = arith.constant 0 : i32
    %c0_i32_0 = arith.constant 0 : i32
    return %c0_i32, %arg1 : i32, i32
  }
  func.func @transform_5(%arg0: i32, %arg1: i32, %arg2: i32) -> (i32, i32) {
    %c0_i32 = arith.constant 0 : i32
    return %arg0, %arg1 : i32, i32
  }
}

module attributes {stable_mosaic.version = 11 : i64} {
  func.func @kernel(%arg0: i32, %arg1: i32, %arg2: i32, %arg3: memref<32x128xbf16, #tpu.memory_space<vmem>>, %arg4: memref<128x128xbf16, #tpu.memory_space<vmem>>, %arg5: memref<1x128xf32, #tpu.memory_space<vmem>>, %arg6: memref<32x128xf32, #tpu.memory_space<vmem>>, %arg7: memref<32x128xf32, #tpu.memory_space<vmem>>) attributes {dimension_semantics = [#tpu.dimension_semantics<parallel>, #tpu.dimension_semantics<parallel>, #tpu.dimension_semantics<arbitrary>], iteration_bounds = array<i64: 1, 1, 1>, scalar_prefetch = 0 : i64, scratch_operands = 1 : i64, tpu.core_type = #tpu.core_type<tc>, window_params = [{transform_indices = @transform_0, window_bounds = array<i64: 32, 128>}, {transform_indices = @transform_1, window_bounds = array<i64: 128, 128>}, {transform_indices = @transform_2, window_bounds = array<i64: 1, 128>}, {transform_indices = @transform_3, window_bounds = array<i64: 32, 128>}]} {
    %c0_i32 = arith.constant 0 : i32
    %0 = arith.cmpi eq, %arg2, %c0_i32 : i32
    %1 = arith.extui %0 : i1 to i32
    %c0_i32_0 = arith.constant 0 : i32
    %2 = arith.cmpi ne, %1, %c0_i32_0 : i32
    scf.if %2 {
      %cst_10 = arith.constant 0.000000e+00 : f32
      %12 = vector.broadcast %cst_10 : f32 to vector<32x128xf32>
      %c0_11 = arith.constant 0 : index
      %c0_12 = arith.constant 0 : index
      %13 = vector.load %arg7[%c0_11, %c0_12] : memref<32x128xf32, #tpu.memory_space<vmem>>, vector<32x128xf32>
      tpu.vector_store %arg7[%c0_11, %c0_12], %12 {strides = array<i32>} : memref<32x128xf32, #tpu.memory_space<vmem>>, vector<32x128xf32>,
    } else {
    }
    %c0 = arith.constant 0 : index
    %c0_1 = arith.constant 0 : index
    %3 = vector.load %arg7[%c0, %c0_1] : memref<32x128xf32, #tpu.memory_space<vmem>>, vector<32x128xf32>
    %c0_2 = arith.constant 0 : index
    %c0_3 = arith.constant 0 : index
    %4 = vector.load %arg3[%c0_2, %c0_3] : memref<32x128xbf16, #tpu.memory_space<vmem>>, vector<32x128xbf16>
    %c0_4 = arith.constant 0 : index
    %c0_5 = arith.constant 0 : index
    %5 = vector.load %arg4[%c0_4, %c0_5] : memref<128x128xbf16, #tpu.memory_space<vmem>>, vector<128x128xbf16>
    %cst = arith.constant dense<0.000000e+00> : vector<32x128xf32>
    %6 = tpu.matmul %4, %5, %cst {dimension_numbers = #tpu.dot_dimension_numbers<[1], [0], [0], [1], [0, 0, 1, 1], [], []>} : vector<32x128xbf16>, vector<128x128xbf16>, vector<32x128xf32> -> vector<32x128xf32>
    %7 = arith.addf %3, %6 : vector<32x128xf32>
    %c0_6 = arith.constant 0 : index
    %c0_7 = arith.constant 0 : index
    %8 = vector.load %arg7[%c0_6, %c0_7] : memref<32x128xf32, #tpu.memory_space<vmem>>, vector<32x128xf32>
    tpu.vector_store %arg7[%c0_6, %c0_7], %7 {strides = array<i32>} : memref<32x128xf32, #tpu.memory_space<vmem>>, vector<32x128xf32>,
    %c0_i32_8 = arith.constant 0 : i32
    %9 = arith.cmpi eq, %arg2, %c0_i32_8 : i32
    %10 = arith.extui %9 : i1 to i32
    %c0_i32_9 = arith.constant 0 : i32
    %11 = arith.cmpi ne, %10, %c0_i32_9 : i32
    scf.if %11 {
      %c0_10 = arith.constant 0 : index
      %c0_11 = arith.constant 0 : index
      %12 = vector.load %arg7[%c0_10, %c0_11] : memref<32x128xf32, #tpu.memory_space<vmem>>, vector<32x128xf32>
      %c0_12 = arith.constant 0 : index
      %c0_13 = arith.constant 0 : index
      %13 = vector.load %arg5[%c0_12, %c0_13] : memref<1x128xf32, #tpu.memory_space<vmem>>, vector<1x128xf32>
      %14 = vector.broadcast %13 : vector<1x128xf32> to vector<32x128xf32>
      %15 = arith.addf %12, %14 : vector<32x128xf32>
      %c0_14 = arith.constant 0 : index
      %c0_15 = arith.constant 0 : index
      %16 = vector.load %arg6[%c0_14, %c0_15] : memref<32x128xf32, #tpu.memory_space<vmem>>, vector<32x128xf32>
      tpu.vector_store %arg6[%c0_14, %c0_15], %15 {strides = array<i32>} : memref<32x128xf32, #tpu.memory_space<vmem>>, vector<32x128xf32>,
    } else {
    }
    return
  }
  func.func @transform_0(%arg0: i32, %arg1: i32, %arg2: i32) -> (i32, i32) {
    %c0_i32 = arith.constant 0 : i32
    return %arg0, %arg2 : i32, i32
  }
  func.func @transform_1(%arg0: i32, %arg1: i32, %arg2: i32) -> (i32, i32) {
    %c0_i32 = arith.constant 0 : i32
    return %arg2, %arg1 : i32, i32
  }
  func.func @transform_2(%arg0: i32, %arg1: i32, %arg2: i32) -> (i32, i32) {
    %c0_i32 = arith.constant 0 : i32
    %c0_i32_0 = arith.constant 0 : i32
    return %c0_i32, %arg1 : i32, i32
  }
  func.func @transform_3(%arg0: i32, %arg1: i32, %arg2: i32) -> (i32, i32) {
    %c0_i32 = arith.constant 0 : i32
    return %arg0, %arg1 : i32, i32
  }
}

</mosaic_0001>

<llo_original>
// kernel: decoder_forward.6
$region0: #{decoder_forward.6}
  #allocation0 [shape = 'u32[]', space=smem, size = 0x4, offset = 0x4, fixed_abs, tag = 'smem constant byte address 0x4 - core index']
  #allocation1 [shape = 'u32[144,128]{1,0:T(1,128)}', space=vmem, size = 0x12000, scoped, tag = 'internal scratch']
  #allocation2 [shape = 'f32[32,128]{1,0:T(8,128)}', space=vmem, size = 0x4000, scoped, tag = 'scratch operand']
  %s0 = inlined_call_operand.vmem [shape: bf16[32,128], index: 0, kind: input, shape index: {}]
  %s1 = inlined_call_operand.vmem [shape: bf16[128,128], index: 1, kind: input, shape index: {}]
  %s2 = inlined_call_operand.vmem [shape: f32[1,128], index: 2, kind: input, shape index: {}]
  %s3 = inlined_call_operand.vmem [shape: bf16[32,128], index: 3, kind: output, shape index: {}]
  %s4 = sld [smem:[#allocation0]]
  $region30: #{decoder_forward.6} parent=0
    _
  %s6 = ssub.s32 1, %s4
  %s7 = scalar_select 0, %s6, %s4
  // Predicated region
  $region2: #{decoder_forward.6} parent=0 // pred_check
    _
  $region3: #{decoder_forward.6} parent=0 // pred_check_branch
    %9 = sbr.rel (0) target = $region5
  $region4: #{decoder_forward.6} parent=0 // pred_region
    _
  $region5: #{decoder_forward.6} parent=0 // pred_fallthru
    _
  // Predicated region
  $region6: #{decoder_forward.6} parent=0 // pred_check
    _
  $region7: #{decoder_forward.6} parent=0 // pred_check_branch
    %11 = sbr.rel (0) target = $region9
  $region8: #{decoder_forward.6} parent=0 // pred_region
    _
  $region9: #{decoder_forward.6} parent=0 // pred_fallthru
    _
  // Predicated region
  $region10: #{decoder_forward.6} parent=0 // pred_check
    _
  $region11: #{decoder_forward.6} parent=0 // pred_check_branch
    %13 = sbr.rel (0) target = $region13
  $region12: #{decoder_forward.6} parent=0 // pred_region
    _
  $region13: #{decoder_forward.6} parent=0 // pred_fallthru
    _
  %p15 = scmp.eq.s32.totalorder 0, 0
  // Predicated region
  $region14: #{decoder_forward.6} parent=0 // pred_check
    %p16 = pneg %p15
  $region15: #{decoder_forward.6} parent=0 // pred_check_branch
    %18 = sbr.rel (%p16) target = $region17
  $region16: #{decoder_forward.6} parent=0 // pred_region
    %19 = vst [vmem:[#allocation2] sm:$0xff] 0.0
    %20 = vst [vmem:[#allocation2 + $0x8] sm:$0xff] 0.0
    %21 = vst [vmem:[#allocation2 + $0x10] sm:$0xff] 0.0
    %22 = vst [vmem:[#allocation2 + $0x18] sm:$0xff] 0.0
  $region17: #{decoder_forward.6} parent=0 // pred_fallthru
    _
  %v23 = vld [vmem:[#allocation2] sm:$0xff]
  %v24 = vld [vmem:[#allocation2 + $0x8] sm:$0xff]
  %v25 = vld [vmem:[#allocation2 + $0x10] sm:$0xff]
  %v26 = vld [vmem:[#allocation2 + $0x18] sm:$0xff]
  %v27 = vld [vmem:[%s0] sm:$0xf]
  %v28 = vld [vmem:[%s0 + $0x4] sm:$0xf]
  %v29 = vld [vmem:[%s0 + $0x8] sm:$0xf]
  %v30 = vld [vmem:[%s0 + $0xc] sm:$0xf]
  %v31 = vld [vmem:[%s1] sm:$0xf]
  %v32 = vld [vmem:[%s1 + $0x4] sm:$0xf]
  %v33 = vld [vmem:[%s1 + $0x8] sm:$0xf]
  %v34 = vld [vmem:[%s1 + $0xc] sm:$0xf]
  %v35 = vld [vmem:[%s1 + $0x10] sm:$0xf]
  %v36 = vld [vmem:[%s1 + $0x14] sm:$0xf]
  %v37 = vld [vmem:[%s1 + $0x18] sm:$0xf]
  %v38 = vld [vmem:[%s1 + $0x1c] sm:$0xf]
  %v39 = vld [vmem:[%s1 + $0x20] sm:$0xf]
  %v40 = vld [vmem:[%s1 + $0x24] sm:$0xf]
  %v41 = vld [vmem:[%s1 + $0x28] sm:$0xf]
  %v42 = vld [vmem:[%s1 + $0x2c] sm:$0xf]
  %v43 = vld [vmem:[%s1 + $0x30] sm:$0xf]
  %v44 = vld [vmem:[%s1 + $0x34] sm:$0xf]
  %v45 = vld [vmem:[%s1 + $0x38] sm:$0xf]
  %v46 = vld [vmem:[%s1 + $0x3c] sm:$0xf]
  %v51 = vunpack.c.l.b16 %v27
  %v52 = vunpack.c.l.b16 %v28
  %v53 = vunpack.c.l.b16 %v29
  %v54 = vunpack.c.l.b16 %v30
  %v55 = vpack.c.b16 %v52, %v51
  %v56 = vpack.c.b16 %v54, %v53
  %v75 = vunpack.c.l.b16 %v31
  %v76 = vunpack.c.l.b16 %v32
  %v77 = vunpack.c.l.b16 %v33
  %v78 = vunpack.c.l.b16 %v34
  %v79 = vunpack.c.l.b16 %v35
  %v80 = vunpack.c.l.b16 %v36
  %v81 = vunpack.c.l.b16 %v37
  %v82 = vunpack.c.l.b16 %v38
  %v83 = vunpack.c.l.b16 %v39
  %v84 = vunpack.c.l.b16 %v40
  %v85 = vunpack.c.l.b16 %v41
  %v86 = vunpack.c.l.b16 %v42
  %v87 = vunpack.c.l.b16 %v43
  %v88 = vunpack.c.l.b16 %v44
  %v89 = vunpack.c.l.b16 %v45
  %v90 = vunpack.c.l.b16 %v46
  %v91 = vpack.c.b16 %v76, %v75
  %v92 = vpack.c.b16 %v78, %v77
  %v93 = vpack.c.b16 %v80, %v79
  %v94 = vpack.c.b16 %v82, %v81
  %v95 = vpack.c.b16 %v84, %v83
  %v96 = vpack.c.b16 %v86, %v85
  %v97 = vpack.c.b16 %v88, %v87
  %v98 = vpack.c.b16 %v90, %v89
  %107 = vmatprep.subr.bf16.mxu0 0
  %108 = vmatpush1.bf16.msra.mxu0 %v98
  %109 = vmatprep.subr.bf16.mxu0 0
  %110 = vmatpush1.bf16.msra.mxu0 %v97
  %111 = vmatprep.subr.bf16.mxu0 0
  %112 = vmatpush1.bf16.msra.mxu0 %v96
  %113 = vmatprep.subr.bf16.mxu0 0
  %114 = vmatpush1.bf16.msra.mxu0 %v95
  %115 = vmatprep.subr.bf16.mxu0 0
  %116 = vmatpush1.bf16.msra.mxu0 %v94
  %117 = vmatprep.subr.bf16.mxu0 0
  %118 = vmatpush1.bf16.msra.mxu0 %v93
  %119 = vmatprep.subr.bf16.mxu0 0
  %120 = vmatpush1.bf16.msra.mxu0 %v92
  %121 = vmatprep.subr.bf16.mxu0 0
  %122 = vmatpush1.bf16.msra.mxu0 %v91
  %123 = vmatprep.subr.bf16.mxu0 0
  %124 = vmatpush2.bf16.msra.mxu0 0
  %125 = vmatprep.subr.bf16.mxu0 0
  %126 = vmatpush2.bf16.msra.mxu0 0
  %127 = vmatprep.subr.bf16.mxu0 0
  %128 = vmatpush2.bf16.msra.mxu0 0
  %129 = vmatprep.subr.bf16.mxu0 0
  %130 = vmatpush2.bf16.msra.mxu0 0
  %131 = vmatprep.subr.bf16.mxu0 0
  %132 = vmatpush2.bf16.msra.mxu0 0
  %133 = vmatprep.subr.bf16.mxu0 0
  %134 = vmatpush2.bf16.msra.mxu0 0
  %135 = vmatprep.subr.bf16.mxu0 0
  %136 = vmatpush2.bf16.msra.mxu0 0
  %137 = vmatprep.subr.bf16.mxu0 0
  %138 = vmatpush2.bf16.msra.mxu0 0
  %139 = vmatprep.mubr.bf16.mxu0 0
  %140 = vmatmul.mubr.bf16.gmra.mxu0 %v55
  %v141 = vpop.f32.mrf.mxu0
  %v142 = vadd.f32 0.0, %v141
  %v143 = vpop.f32.mrf.mxu0
  %v144 = vpop.f32.mrf.mxu0
  %v145 = vadd.f32 0.0, %v144
  %v146 = vpop.f32.mrf.mxu0
  %147 = vmatprep.mubr.bf16.mxu0 0
  %148 = vmatmul.mubr.bf16.gmra.mxu0 %v56
  %v149 = vpop.f32.mrf.mxu0
  %v150 = vadd.f32 0.0, %v149
  %v151 = vpop.f32.mrf.mxu0
  %v152 = vpop.f32.mrf.mxu0
  %v153 = vadd.f32 0.0, %v152
  %v154 = vpop.f32.mrf.mxu0
  %155 = vdwg.mxu0
  %v156 = vadd.f32 %v23, %v142
  %v157 = vadd.f32 %v24, %v145
  %v158 = vadd.f32 %v25, %v150
  %v159 = vadd.f32 %v26, %v153
  %160 = vst [vmem:[#allocation2] sm:$0xff] %v156
  %161 = vst [vmem:[#allocation2 + $0x8] sm:$0xff] %v157
  %162 = vst [vmem:[#allocation2 + $0x10] sm:$0xff] %v158
  %163 = vst [vmem:[#allocation2 + $0x18] sm:$0xff] %v159
  // Predicated region
  $region18: #{decoder_forward.6} parent=0 // pred_check
    %p164 = pneg %p15
  $region19: #{decoder_forward.6} parent=0 // pred_check_branch
    %166 = sbr.rel (%p164) target = $region21
  $region20: #{decoder_forward.6} parent=0 // pred_region
    %v167 = vld [vmem:[#allocation2] sm:$0xff]
    %v168 = vld [vmem:[#allocation2 + $0x8] sm:$0xff]
    %v169 = vld [vmem:[#allocation2 + $0x10] sm:$0xff]
    %v170 = vld [vmem:[#allocation2 + $0x18] sm:$0xff]
    %v171 = vld [vmem:[%s2] sm:$0x1]
    %v173 = vlaneseq
    %v174 = vshrl.u32 %v173, 7
    %v175 = vsub.s32 0, %v174
    %v176 = vrot.slane %v171, %v175
    %v178 = vadd.f32 %v167, %v176
    %v179 = vadd.f32 %v168, %v176
    %v180 = vadd.f32 %v169, %v176
    %v181 = vadd.f32 %v170, %v176
    %v182 = vpack.c.bf16 %v179, %v178
    %v183 = vpack.c.bf16 %v181, %v180
    %v186 = vunpack.c.l.b16 %v182
    %v187 = vunpack.c.h.b16 %v182
    %v188 = vunpack.c.l.b16 %v183
    %v189 = vunpack.c.h.b16 %v183
    %v190 = vpack.c.b16 %v186, %v186
    %v191 = vpack.c.b16 %v187, %v187
    %v192 = vpack.c.b16 %v188, %v188
    %v193 = vpack.c.b16 %v189, %v189
    %198 = vst [vmem:[%s3] sm:$0xf] %v190
    %199 = vst [vmem:[%s3 + $0x4] sm:$0xf] %v191
    %200 = vst [vmem:[%s3 + $0x8] sm:$0xf] %v192
    %201 = vst [vmem:[%s3 + $0xc] sm:$0xf] %v193
  $region21: #{decoder_forward.6} parent=0 // pred_fallthru
    _
  // Predicated region
  $region22: #{decoder_forward.6} parent=0 // pred_check
    _
  $region23: #{decoder_forward.6} parent=0 // pred_check_branch
    %203 = sbr.rel (0) target = $region25
  $region24: #{decoder_forward.6} parent=0 // pred_region
    _
  $region25: #{decoder_forward.6} parent=0 // pred_fallthru
    _
  // Predicated region
  $region26: #{decoder_forward.6} parent=0 // pred_check
    _
  $region27: #{decoder_forward.6} parent=0 // pred_check_branch
    %205 = sbr.rel (0) target = $region29
  $region28: #{decoder_forward.6} parent=0 // pred_region
    _
  $region29: #{decoder_forward.6} parent=0 // pred_fallthru
    _

// kernel: decoder_forward.8
$region0: #{decoder_forward.8}
  #allocation0 [shape = 'u32[]', space=smem, size = 0x4, offset = 0x4, fixed_abs, tag = 'smem constant byte address 0x4 - core index']
  #allocation1 [shape = 'u32[144,128]{1,0:T(1,128)}', space=vmem, size = 0x12000, scoped, tag = 'internal scratch']
  #allocation2 [shape = 'f32[32,128]{1,0:T(8,128)}', space=vmem, size = 0x4000, scoped, tag = 'scratch operand']
  %s0 = inlined_call_operand.vmem [shape: bf16[32,256], index: 0, kind: input, shape index: {}]
  %s1 = inlined_call_operand.vmem [shape: bf16[256,128], index: 1, kind: input, shape index: {}]
  %s2 = inlined_call_operand.vmem [shape: f32[1,128], index: 2, kind: input, shape index: {}]
  %s3 = inlined_call_operand.vmem [shape: bf16[32,128], index: 3, kind: output, shape index: {}]
  %s4 = sld [smem:[#allocation0]]
  $region30: #{decoder_forward.8} parent=0
    _
  %s6 = ssub.s32 1, %s4
  %s7 = scalar_select 0, %s6, %s4
  // Predicated region
  $region2: #{decoder_forward.8} parent=0 // pred_check
    _
  $region3: #{decoder_forward.8} parent=0 // pred_check_branch
    %9 = sbr.rel (0) target = $region5
  $region4: #{decoder_forward.8} parent=0 // pred_region
    _
  $region5: #{decoder_forward.8} parent=0 // pred_fallthru
    _
  // Predicated region
  $region6: #{decoder_forward.8} parent=0 // pred_check
    _
  $region7: #{decoder_forward.8} parent=0 // pred_check_branch
    %11 = sbr.rel (0) target = $region9
  $region8: #{decoder_forward.8} parent=0 // pred_region
    _
  $region9: #{decoder_forward.8} parent=0 // pred_fallthru
    _
  // Predicated region
  $region10: #{decoder_forward.8} parent=0 // pred_check
    _
  $region11: #{decoder_forward.8} parent=0 // pred_check_branch
    %13 = sbr.rel (0) target = $region13
  $region12: #{decoder_forward.8} parent=0 // pred_region
    _
  $region13: #{decoder_forward.8} parent=0 // pred_fallthru
    _
  %p15 = scmp.eq.s32.totalorder 0, 0
  // Predicated region
  $region14: #{decoder_forward.8} parent=0 // pred_check
    %p16 = pneg %p15
  $region15: #{decoder_forward.8} parent=0 // pred_check_branch
    %18 = sbr.rel (%p16) target = $region17
  $region16: #{decoder_forward.8} parent=0 // pred_region
    %19 = vst [vmem:[#allocation2] sm:$0xff] 0.0
    %20 = vst [vmem:[#allocation2 + $0x8] sm:$0xff] 0.0
    %21 = vst [vmem:[#allocation2 + $0x10] sm:$0xff] 0.0
    %22 = vst [vmem:[#allocation2 + $0x18] sm:$0xff] 0.0
  $region17: #{decoder_forward.8} parent=0 // pred_fallthru
    _
  %v23 = vld [vmem:[#allocation2] sm:$0xff]
  %v24 = vld [vmem:[#allocation2 + $0x8] sm:$0xff]
  %v25 = vld [vmem:[#allocation2 + $0x10] sm:$0xff]
  %v26 = vld [vmem:[#allocation2 + $0x18] sm:$0xff]
  %v27 = vld [vmem:[%s0] sm:$0xff]
  %v28 = vld [vmem:[%s0 + $0x8] sm:$0xff]
  %v29 = vld [vmem:[%s0 + $0x10] sm:$0xff]
  %v30 = vld [vmem:[%s0 + $0x18] sm:$0xff]
  %v31 = vld [vmem:[%s1] sm:$0xf]
  %v32 = vld [vmem:[%s1 + $0x4] sm:$0xf]
  %v33 = vld [vmem:[%s1 + $0x8] sm:$0xf]
  %v34 = vld [vmem:[%s1 + $0xc] sm:$0xf]
  %v35 = vld [vmem:[%s1 + $0x10] sm:$0xf]
  %v36 = vld [vmem:[%s1 + $0x14] sm:$0xf]
  %v37 = vld [vmem:[%s1 + $0x18] sm:$0xf]
  %v38 = vld [vmem:[%s1 + $0x1c] sm:$0xf]
  %v39 = vld [vmem:[%s1 + $0x20] sm:$0xf]
  %v40 = vld [vmem:[%s1 + $0x24] sm:$0xf]
  %v41 = vld [vmem:[%s1 + $0x28] sm:$0xf]
  %v42 = vld [vmem:[%s1 + $0x2c] sm:$0xf]
  %v43 = vld [vmem:[%s1 + $0x30] sm:$0xf]
  %v44 = vld [vmem:[%s1 + $0x34] sm:$0xf]
  %v45 = vld [vmem:[%s1 + $0x38] sm:$0xf]
  %v46 = vld [vmem:[%s1 + $0x3c] sm:$0xf]
  %v47 = vld [vmem:[%s1 + $0x40] sm:$0xf]
  %v48 = vld [vmem:[%s1 + $0x44] sm:$0xf]
  %v49 = vld [vmem:[%s1 + $0x48] sm:$0xf]
  %v50 = vld [vmem:[%s1 + $0x4c] sm:$0xf]
  %v51 = vld [vmem:[%s1 + $0x50] sm:$0xf]
  %v52 = vld [vmem:[%s1 + $0x54] sm:$0xf]
  %v53 = vld [vmem:[%s1 + $0x58] sm:$0xf]
  %v54 = vld [vmem:[%s1 + $0x5c] sm:$0xf]
  %v55 = vld [vmem:[%s1 + $0x60] sm:$0xf]
  %v56 = vld [vmem:[%s1 + $0x64] sm:$0xf]
  %v57 = vld [vmem:[%s1 + $0x68] sm:$0xf]
  %v58 = vld [vmem:[%s1 + $0x6c] sm:$0xf]
  %v59 = vld [vmem:[%s1 + $0x70] sm:$0xf]
  %v60 = vld [vmem:[%s1 + $0x74] sm:$0xf]
  %v61 = vld [vmem:[%s1 + $0x78] sm:$0xf]
  %v62 = vld [vmem:[%s1 + $0x7c] sm:$0xf]
  %v67 = vunpack.c.l.b16 %v27
  %v68 = vunpack.c.h.b16 %v27
  %v69 = vunpack.c.l.b16 %v28
  %v70 = vunpack.c.h.b16 %v28
  %v71 = vunpack.c.l.b16 %v29
  %v72 = vunpack.c.h.b16 %v29
  %v73 = vunpack.c.l.b16 %v30
  %v74 = vunpack.c.h.b16 %v30
  %v75 = vpack.c.b16 %v69, %v67
  %v76 = vpack.c.b16 %v70, %v68
  %v77 = vpack.c.b16 %v73, %v71
  %v78 = vpack.c.b16 %v74, %v72
  %v115 = vunpack.c.l.b16 %v31
  %v116 = vunpack.c.l.b16 %v32
  %v117 = vunpack.c.l.b16 %v33
  %v118 = vunpack.c.l.b16 %v34
  %v119 = vunpack.c.l.b16 %v35
  %v120 = vunpack.c.l.b16 %v36
  %v121 = vunpack.c.l.b16 %v37
  %v122 = vunpack.c.l.b16 %v38
  %v123 = vunpack.c.l.b16 %v39
  %v124 = vunpack.c.l.b16 %v40
  %v125 = vunpack.c.l.b16 %v41
  %v126 = vunpack.c.l.b16 %v42
  %v127 = vunpack.c.l.b16 %v43
  %v128 = vunpack.c.l.b16 %v44
  %v129 = vunpack.c.l.b16 %v45
  %v130 = vunpack.c.l.b16 %v46
  %v131 = vunpack.c.l.b16 %v47
  %v132 = vunpack.c.l.b16 %v48
  %v133 = vunpack.c.l.b16 %v49
  %v134 = vunpack.c.l.b16 %v50
  %v135 = vunpack.c.l.b16 %v51
  %v136 = vunpack.c.l.b16 %v52
  %v137 = vunpack.c.l.b16 %v53
  %v138 = vunpack.c.l.b16 %v54
  %v139 = vunpack.c.l.b16 %v55
  %v140 = vunpack.c.l.b16 %v56
  %v141 = vunpack.c.l.b16 %v57
  %v142 = vunpack.c.l.b16 %v58
  %v143 = vunpack.c.l.b16 %v59
  %v144 = vunpack.c.l.b16 %v60
  %v145 = vunpack.c.l.b16 %v61
  %v146 = vunpack.c.l.b16 %v62
  %v147 = vpack.c.b16 %v116, %v115
  %v148 = vpack.c.b16 %v118, %v117
  %v149 = vpack.c.b16 %v120, %v119
  %v150 = vpack.c.b16 %v122, %v121
  %v151 = vpack.c.b16 %v124, %v123
  %v152 = vpack.c.b16 %v126, %v125
  %v153 = vpack.c.b16 %v128, %v127
  %v154 = vpack.c.b16 %v130, %v129
  %v155 = vpack.c.b16 %v132, %v131
  %v156 = vpack.c.b16 %v134, %v133
  %v157 = vpack.c.b16 %v136, %v135
  %v158 = vpack.c.b16 %v138, %v137
  %v159 = vpack.c.b16 %v140, %v139
  %v160 = vpack.c.b16 %v142, %v141
  %v161 = vpack.c.b16 %v144, %v143
  %v162 = vpack.c.b16 %v146, %v145
  %179 = vmatprep.subr.bf16.mxu0 0
  %180 = vmatpush1.bf16.msra.mxu0 %v154
  %181 = vmatprep.subr.bf16.mxu0 0
  %182 = vmatpush1.bf16.msra.mxu0 %v153
  %183 = vmatprep.subr.bf16.mxu0 0
  %184 = vmatpush1.bf16.msra.mxu0 %v152
  %185 = vmatprep.subr.bf16.mxu0 0
  %186 = vmatpush1.bf16.msra.mxu0 %v151
  %187 = vmatprep.subr.bf16.mxu0 0
  %188 = vmatpush1.bf16.msra.mxu0 %v150
  %189 = vmatprep.subr.bf16.mxu0 0
  %190 = vmatpush1.bf16.msra.mxu0 %v149
  %191 = vmatprep.subr.bf16.mxu0 0
  %192 = vmatpush1.bf16.msra.mxu0 %v148
  %193 = vmatprep.subr.bf16.mxu0 0
  %194 = vmatpush1.bf16.msra.mxu0 %v147
  %195 = vmatprep.subr.bf16.mxu0 0
  %196 = vmatpush2.bf16.msra.mxu0 %v162
  %197 = vmatprep.subr.bf16.mxu0 0
  %198 = vmatpush2.bf16.msra.mxu0 %v161
  %199 = vmatprep.subr.bf16.mxu0 0
  %200 = vmatpush2.bf16.msra.mxu0 %v160
  %201 = vmatprep.subr.bf16.mxu0 0
  %202 = vmatpush2.bf16.msra.mxu0 %v159
  %203 = vmatprep.subr.bf16.mxu0 0
  %204 = vmatpush2.bf16.msra.mxu0 %v158
  %205 = vmatprep.subr.bf16.mxu0 0
  %206 = vmatpush2.bf16.msra.mxu0 %v157
  %207 = vmatprep.subr.bf16.mxu0 0
  %208 = vmatpush2.bf16.msra.mxu0 %v156
  %209 = vmatprep.subr.bf16.mxu0 0
  %210 = vmatpush2.bf16.msra.mxu0 %v155
  %211 = vmatprep.mubr.bf16.mxu0 %v76
  %212 = vmatmul.mubr.bf16.gmra.mxu0 %v75
  %v213 = vpop.f32.mrf.mxu0
  %v214 = vadd.f32 0.0, %v213
  %v215 = vpop.f32.mrf.mxu0
  %v216 = vpop.f32.mrf.mxu0
  %v217 = vadd.f32 0.0, %v216
  %v218 = vpop.f32.mrf.mxu0
  %219 = vmatprep.mubr.bf16.mxu0 %v78
  %220 = vmatmul.mubr.bf16.gmra.mxu0 %v77
  %v221 = vpop.f32.mrf.mxu0
  %v222 = vadd.f32 0.0, %v221
  %v223 = vpop.f32.mrf.mxu0
  %v224 = vpop.f32.mrf.mxu0
  %v225 = vadd.f32 0.0, %v224
  %v226 = vpop.f32.mrf.mxu0
  %227 = vdwg.mxu0
  %v228 = vadd.f32 %v23, %v214
  %v229 = vadd.f32 %v24, %v217
  %v230 = vadd.f32 %v25, %v222
  %v231 = vadd.f32 %v26, %v225
  %232 = vst [vmem:[#allocation2] sm:$0xff] %v228
  %233 = vst [vmem:[#allocation2 + $0x8] sm:$0xff] %v229
  %234 = vst [vmem:[#allocation2 + $0x10] sm:$0xff] %v230
  %235 = vst [vmem:[#allocation2 + $0x18] sm:$0xff] %v231
  // Predicated region
  $region18: #{decoder_forward.8} parent=0 // pred_check
    %p236 = pneg %p15
  $region19: #{decoder_forward.8} parent=0 // pred_check_branch
    %238 = sbr.rel (%p236) target = $region21
  $region20: #{decoder_forward.8} parent=0 // pred_region
    %v239 = vld [vmem:[#allocation2] sm:$0xff]
    %v240 = vld [vmem:[#allocation2 + $0x8] sm:$0xff]
    %v241 = vld [vmem:[#allocation2 + $0x10] sm:$0xff]
    %v242 = vld [vmem:[#allocation2 + $0x18] sm:$0xff]
    %v243 = vld [vmem:[%s2] sm:$0x1]
    %v245 = vlaneseq
    %v246 = vshrl.u32 %v245, 7
    %v247 = vsub.s32 0, %v246
    %v248 = vrot.slane %v243, %v247
    %v250 = vadd.f32 %v239, %v248
    %v251 = vadd.f32 %v240, %v248
    %v252 = vadd.f32 %v241, %v248
    %v253 = vadd.f32 %v242, %v248
    %v254 = vpack.c.bf16 %v251, %v250
    %v255 = vpack.c.bf16 %v253, %v252
    %v258 = vunpack.c.l.b16 %v254
    %v259 = vunpack.c.h.b16 %v254
    %v260 = vunpack.c.l.b16 %v255
    %v261 = vunpack.c.h.b16 %v255
    %v262 = vpack.c.b16 %v258, %v258
    %v263 = vpack.c.b16 %v259, %v259
    %v264 = vpack.c.b16 %v260, %v260
    %v265 = vpack.c.b16 %v261, %v261
    %270 = vst [vmem:[%s3] sm:$0xf] %v262
    %271 = vst [vmem:[%s3 + $0x4] sm:$0xf] %v263
    %272 = vst [vmem:[%s3 + $0x8] sm:$0xf] %v264
    %273 = vst [vmem:[%s3 + $0xc] sm:$0xf] %v265
  $region21: #{decoder_forward.8} parent=0 // pred_fallthru
    _
  // Predicated region
  $region22: #{decoder_forward.8} parent=0 // pred_check
    _
  $region23: #{decoder_forward.8} parent=0 // pred_check_branch
    %275 = sbr.rel (0) target = $region25
  $region24: #{decoder_forward.8} parent=0 // pred_region
    _
  $region25: #{decoder_forward.8} parent=0 // pred_fallthru
    _
  // Predicated region
  $region26: #{decoder_forward.8} parent=0 // pred_check
    _
  $region27: #{decoder_forward.8} parent=0 // pred_check_branch
    %277 = sbr.rel (0) target = $region29
  $region28: #{decoder_forward.8} parent=0 // pred_region
    _
  $region29: #{decoder_forward.8} parent=0 // pred_fallthru
    _

// kernel: decoder_forward.7
$region0: #{decoder_forward.7}
  #allocation0 [shape = 'u32[]', space=smem, size = 0x4, offset = 0x4, fixed_abs, tag = 'smem constant byte address 0x4 - core index']
  #allocation1 [shape = 'u32[144,128]{1,0:T(1,128)}', space=vmem, size = 0x12000, scoped, tag = 'internal scratch']
  #allocation2 [shape = 'f32[72,128]{1,0:T(8,128)}', space=vmem, size = 0x9000, scoped, tag = 'scratch operand']
  %s0 = inlined_call_operand.vmem [shape: bf16[72,256], index: 0, kind: input, shape index: {}]
  %s1 = inlined_call_operand.vmem [shape: bf16[72,256], index: 1, kind: input, shape index: {}]
  %s2 = inlined_call_operand.vmem [shape: bf16[256,128], index: 2, kind: input, shape index: {}]
  %s3 = inlined_call_operand.vmem [shape: bf16[256,128], index: 3, kind: input, shape index: {}]
  %s4 = inlined_call_operand.vmem [shape: f32[1,128], index: 4, kind: input, shape index: {}]
  %s5 = inlined_call_operand.vmem [shape: bf16[72,128], index: 5, kind: output, shape index: {}]
  %s6 = sld [smem:[#allocation0]]
  $region38: #{decoder_forward.7} parent=0
    _
  %s8 = ssub.s32 1, %s6
  %s9 = scalar_select 0, %s8, %s6
  // Predicated region
  $region2: #{decoder_forward.7} parent=0 // pred_check
    _
  $region3: #{decoder_forward.7} parent=0 // pred_check_branch
    %11 = sbr.rel (0) target = $region5
  $region4: #{decoder_forward.7} parent=0 // pred_region
    _
  $region5: #{decoder_forward.7} parent=0 // pred_fallthru
    _
  // Predicated region
  $region6: #{decoder_forward.7} parent=0 // pred_check
    _
  $region7: #{decoder_forward.7} parent=0 // pred_check_branch
    %13 = sbr.rel (0) target = $region9
  $region8: #{decoder_forward.7} parent=0 // pred_region
    _
  $region9: #{decoder_forward.7} parent=0 // pred_fallthru
    _
  // Predicated region
  $region10: #{decoder_forward.7} parent=0 // pred_check
    _
  $region11: #{decoder_forward.7} parent=0 // pred_check_branch
    %15 = sbr.rel (0) target = $region13
  $region12: #{decoder_forward.7} parent=0 // pred_region
    _
  $region13: #{decoder_forward.7} parent=0 // pred_fallthru
    _
  // Predicated region
  $region14: #{decoder_forward.7} parent=0 // pred_check
    _
  $region15: #{decoder_forward.7} parent=0 // pred_check_branch
    %17 = sbr.rel (0) target = $region17
  $region16: #{decoder_forward.7} parent=0 // pred_region
    _
  $region17: #{decoder_forward.7} parent=0 // pred_fallthru
    _
  // Predicated region
  $region18: #{decoder_forward.7} parent=0 // pred_check
    _
  $region19: #{decoder_forward.7} parent=0 // pred_check_branch
    %19 = sbr.rel (0) target = $region21
  $region20: #{decoder_forward.7} parent=0 // pred_region
    _
  $region21: #{decoder_forward.7} parent=0 // pred_fallthru
    _
  %p21 = scmp.eq.s32.totalorder 0, 0
  // Predicated region
  $region22: #{decoder_forward.7} parent=0 // pred_check
    %p22 = pneg %p21
  $region23: #{decoder_forward.7} parent=0 // pred_check_branch
    %24 = sbr.rel (%p22) target = $region25
  $region24: #{decoder_forward.7} parent=0 // pred_region
    %25 = vst [vmem:[#allocation2] sm:$0xff] 0.0
    %26 = vst [vmem:[#allocation2 + $0x8] sm:$0xff] 0.0
    %27 = vst [vmem:[#allocation2 + $0x10] sm:$0xff] 0.0
    %28 = vst [vmem:[#allocation2 + $0x18] sm:$0xff] 0.0
    %29 = vst [vmem:[#allocation2 + $0x20] sm:$0xff] 0.0
    %30 = vst [vmem:[#allocation2 + $0x28] sm:$0xff] 0.0
    %31 = vst [vmem:[#allocation2 + $0x30] sm:$0xff] 0.0
    %32 = vst [vmem:[#allocation2 + $0x38] sm:$0xff] 0.0
    %33 = vst [vmem:[#allocation2 + $0x40] sm:$0xff] 0.0
  $region25: #{decoder_forward.7} parent=0 // pred_fallthru
    _
  %v34 = vld [vmem:[#allocation2] sm:$0xff]
  %v35 = vld [vmem:[#allocation2 + $0x8] sm:$0xff]
  %v36 = vld [vmem:[#allocation2 + $0x10] sm:$0xff]
  %v37 = vld [vmem:[#allocation2 + $0x18] sm:$0xff]
  %v38 = vld [vmem:[#allocation2 + $0x20] sm:$0xff]
  %v39 = vld [vmem:[#allocation2 + $0x28] sm:$0xff]
  %v40 = vld [vmem:[#allocation2 + $0x30] sm:$0xff]
  %v41 = vld [vmem:[#allocation2 + $0x38] sm:$0xff]
  %v42 = vld [vmem:[#allocation2 + $0x40] sm:$0xff]
  %v43 = vld [vmem:[%s0] sm:$0xff]
  %v44 = vld [vmem:[%s0 + $0x8] sm:$0xff]
  %v45 = vld [vmem:[%s0 + $0x10] sm:$0xff]
  %v46 = vld [vmem:[%s0 + $0x18] sm:$0xff]
  %v47 = vld [vmem:[%s0 + $0x20] sm:$0xff]
  %v48 = vld [vmem:[%s0 + $0x28] sm:$0xff]
  %v49 = vld [vmem:[%s0 + $0x30] sm:$0xff]
  %v50 = vld [vmem:[%s0 + $0x38] sm:$0xff]
  %v51 = vld [vmem:[%s0 + $0x40] sm:$0xff]
  %v52 = vld [vmem:[%s2] sm:$0xf]
  %v53 = vld [vmem:[%s2 + $0x4] sm:$0xf]
  %v54 = vld [vmem:[%s2 + $0x8] sm:$0xf]
  %v55 = vld [vmem:[%s2 + $0xc] sm:$0xf]
  %v56 = vld [vmem:[%s2 + $0x10] sm:$0xf]
  %v57 = vld [vmem:[%s2 + $0x14] sm:$0xf]
  %v58 = vld [vmem:[%s2 + $0x18] sm:$0xf]
  %v59 = vld [vmem:[%s2 + $0x1c] sm:$0xf]
  %v60 = vld [vmem:[%s2 + $0x20] sm:$0xf]
  %v61 = vld [vmem:[%s2 + $0x24] sm:$0xf]
  %v62 = vld [vmem:[%s2 + $0x28] sm:$0xf]
  %v63 = vld [vmem:[%s2 + $0x2c] sm:$0xf]
  %v64 = vld [vmem:[%s2 + $0x30] sm:$0xf]
  %v65 = vld [vmem:[%s2 + $0x34] sm:$0xf]
  %v66 = vld [vmem:[%s2 + $0x38] sm:$0xf]
  %v67 = vld [vmem:[%s2 + $0x3c] sm:$0xf]
  %v68 = vld [vmem:[%s2 + $0x40] sm:$0xf]
  %v69 = vld [vmem:[%s2 + $0x44] sm:$0xf]
  %v70 = vld [vmem:[%s2 + $0x48] sm:$0xf]
  %v71 = vld [vmem:[%s2 + $0x4c] sm:$0xf]
  %v72 = vld [vmem:[%s2 + $0x50] sm:$0xf]
  %v73 = vld [vmem:[%s2 + $0x54] sm:$0xf]
  %v74 = vld [vmem:[%s2 + $0x58] sm:$0xf]
  %v75 = vld [vmem:[%s2 + $0x5c] sm:$0xf]
  %v76 = vld [vmem:[%s2 + $0x60] sm:$0xf]
  %v77 = vld [vmem:[%s2 + $0x64] sm:$0xf]
  %v78 = vld [vmem:[%s2 + $0x68] sm:$0xf]
  %v79 = vld [vmem:[%s2 + $0x6c] sm:$0xf]
  %v80 = vld [vmem:[%s2 + $0x70] sm:$0xf]
  %v81 = vld [vmem:[%s2 + $0x74] sm:$0xf]
  %v82 = vld [vmem:[%s2 + $0x78] sm:$0xf]
  %v83 = vld [vmem:[%s2 + $0x7c] sm:$0xf]
  %v93 = vunpack.c.l.b16 %v43
  %v94 = vunpack.c.h.b16 %v43
  %v95 = vunpack.c.l.b16 %v44
  %v96 = vunpack.c.h.b16 %v44
  %v97 = vunpack.c.l.b16 %v45
  %v98 = vunpack.c.h.b16 %v45
  %v99 = vunpack.c.l.b16 %v46
  %v100 = vunpack.c.h.b16 %v46
  %v101 = vunpack.c.l.b16 %v47
  %v102 = vunpack.c.h.b16 %v47
  %v103 = vunpack.c.l.b16 %v48
  %v104 = vunpack.c.h.b16 %v48
  %v105 = vunpack.c.l.b16 %v49
  %v106 = vunpack.c.h.b16 %v49
  %v107 = vunpack.c.l.b16 %v50
  %v108 = vunpack.c.h.b16 %v50
  %v109 = vunpack.c.l.b16 %v51
  %v110 = vunpack.c.h.b16 %v51
  %v111 = vpack.c.b16 %v95, %v93
  %v112 = vpack.c.b16 %v96, %v94
  %v113 = vpack.c.b16 %v99, %v97
  %v114 = vpack.c.b16 %v100, %v98
  %v115 = vpack.c.b16 %v103, %v101
  %v116 = vpack.c.b16 %v104, %v102
  %v117 = vpack.c.b16 %v107, %v105
  %v118 = vpack.c.b16 %v108, %v106
  %v119 = vpack.c.b16 %v109, %v109
  %v120 = vpack.c.b16 %v110, %v110
  %v163 = vunpack.c.l.b16 %v52
  %v164 = vunpack.c.l.b16 %v53
  %v165 = vunpack.c.l.b16 %v54
  %v166 = vunpack.c.l.b16 %v55
  %v167 = vunpack.c.l.b16 %v56
  %v168 = vunpack.c.l.b16 %v57
  %v169 = vunpack.c.l.b16 %v58
  %v170 = vunpack.c.l.b16 %v59
  %v171 = vunpack.c.l.b16 %v60
  %v172 = vunpack.c.l.b16 %v61
  %v173 = vunpack.c.l.b16 %v62
  %v174 = vunpack.c.l.b16 %v63
  %v175 = vunpack.c.l.b16 %v64
  %v176 = vunpack.c.l.b16 %v65
  %v177 = vunpack.c.l.b16 %v66
  %v178 = vunpack.c.l.b16 %v67
  %v179 = vunpack.c.l.b16 %v68
  %v180 = vunpack.c.l.b16 %v69
  %v181 = vunpack.c.l.b16 %v70
  %v182 = vunpack.c.l.b16 %v71
  %v183 = vunpack.c.l.b16 %v72
  %v184 = vunpack.c.l.b16 %v73
  %v185 = vunpack.c.l.b16 %v74
  %v186 = vunpack.c.l.b16 %v75
  %v187 = vunpack.c.l.b16 %v76
  %v188 = vunpack.c.l.b16 %v77
  %v189 = vunpack.c.l.b16 %v78
  %v190 = vunpack.c.l.b16 %v79
  %v191 = vunpack.c.l.b16 %v80
  %v192 = vunpack.c.l.b16 %v81
  %v193 = vunpack.c.l.b16 %v82
  %v194 = vunpack.c.l.b16 %v83
  %v195 = vpack.c.b16 %v164, %v163
  %v196 = vpack.c.b16 %v166, %v165
  %v197 = vpack.c.b16 %v168, %v167
  %v198 = vpack.c.b16 %v170, %v169
  %v199 = vpack.c.b16 %v172, %v171
  %v200 = vpack.c.b16 %v174, %v173
  %v201 = vpack.c.b16 %v176, %v175
  %v202 = vpack.c.b16 %v178, %v177
  %v203 = vpack.c.b16 %v180, %v179
  %v204 = vpack.c.b16 %v182, %v181
  %v205 = vpack.c.b16 %v184, %v183
  %v206 = vpack.c.b16 %v186, %v185
  %v207 = vpack.c.b16 %v188, %v187
  %v208 = vpack.c.b16 %v190, %v189
  %v209 = vpack.c.b16 %v192, %v191
  %v210 = vpack.c.b16 %v194, %v193
  %227 = vmatprep.subr.bf16.mxu0 0
  %228 = vmatpush1.bf16.msra.mxu0 %v202
  %229 = vmatprep.subr.bf16.mxu0 0
  %230 = vmatpush1.bf16.msra.mxu0 %v201
  %231 = vmatprep.subr.bf16.mxu0 0
  %232 = vmatpush1.bf16.msra.mxu0 %v200
  %233 = vmatprep.subr.bf16.mxu0 0
  %234 = vmatpush1.bf16.msra.mxu0 %v199
  %235 = vmatprep.subr.bf16.mxu0 0
  %236 = vmatpush1.bf16.msra.mxu0 %v198
  %237 = vmatprep.subr.bf16.mxu0 0
  %238 = vmatpush1.bf16.msra.mxu0 %v197
  %239 = vmatprep.subr.bf16.mxu0 0
  %240 = vmatpush1.bf16.msra.mxu0 %v196
  %241 = vmatprep.subr.bf16.mxu0 0
  %242 = vmatpush1.bf16.msra.mxu0 %v195
  %243 = vmatprep.subr.bf16.mxu0 0
  %244 = vmatpush2.bf16.msra.mxu0 %v210
  %245 = vmatprep.subr.bf16.mxu0 0
  %246 = vmatpush2.bf16.msra.mxu0 %v209
  %247 = vmatprep.subr.bf16.mxu0 0
  %248 = vmatpush2.bf16.msra.mxu0 %v208
  %249 = vmatprep.subr.bf16.mxu0 0
  %250 = vmatpush2.bf16.msra.mxu0 %v207
  %251 = vmatprep.subr.bf16.mxu0 0
  %252 = vmatpush2.bf16.msra.mxu0 %v206
  %253 = vmatprep.subr.bf16.mxu0 0
  %254 = vmatpush2.bf16.msra.mxu0 %v205
  %255 = vmatprep.subr.bf16.mxu0 0
  %256 = vmatpush2.bf16.msra.mxu0 %v204
  %257 = vmatprep.subr.bf16.mxu0 0
  %258 = vmatpush2.bf16.msra.mxu0 %v203
  %259 = vmatprep.mubr.bf16.mxu0 %v112
  %260 = vmatmul.mubr.bf16.gmra.mxu0 %v111
  %v261 = vpop.f32.mrf.mxu0
  %v262 = vadd.f32 0.0, %v261
  %v263 = vpop.f32.mrf.mxu0
  %v264 = vpop.f32.mrf.mxu0
  %v265 = vadd.f32 0.0, %v264
  %v266 = vpop.f32.mrf.mxu0
  %267 = vmatprep.mubr.bf16.mxu0 %v114
  %268 = vmatmul.mubr.bf16.gmra.mxu0 %v113
  %v269 = vpop.f32.mrf.mxu0
  %v270 = vadd.f32 0.0, %v269
  %v271 = vpop.f32.mrf.mxu0
  %v272 = vpop.f32.mrf.mxu0
  %v273 = vadd.f32 0.0, %v272
  %v274 = vpop.f32.mrf.mxu0
  %275 = vmatprep.mubr.bf16.mxu0 %v116
  %276 = vmatmul.mubr.bf16.gmra.mxu0 %v115
  %v277 = vpop.f32.mrf.mxu0
  %v278 = vadd.f32 0.0, %v277
  %v279 = vpop.f32.mrf.mxu0
  %v280 = vpop.f32.mrf.mxu0
  %v281 = vadd.f32 0.0, %v280
  %v282 = vpop.f32.mrf.mxu0
  %283 = vmatprep.mubr.bf16.mxu0 %v118
  %284 = vmatmul.mubr.bf16.gmra.mxu0 %v117
  %v285 = vpop.f32.mrf.mxu0
  %v286 = vadd.f32 0.0, %v285
  %v287 = vpop.f32.mrf.mxu0
  %v288 = vpop.f32.mrf.mxu0
  %v289 = vadd.f32 0.0, %v288
  %v290 = vpop.f32.mrf.mxu0
  %291 = vmatprep.mubr.bf16.mxu0 %v120
  %292 = vmatmul.mubr.bf16.gmra.mxu0 %v119
  %v293 = vpop.f32.mrf.mxu0
  %v294 = vadd.f32 0.0, %v293
  %v295 = vpop.f32.mrf.mxu0
  %v296 = vpop.f32.mrf.mxu0
  %v297 = vpop.f32.mrf.mxu0
  %298 = vdwg.mxu0
  %v299 = vadd.f32 %v34, %v262
  %v300 = vadd.f32 %v35, %v265
  %v301 = vadd.f32 %v36, %v270
  %v302 = vadd.f32 %v37, %v273
  %v303 = vadd.f32 %v38, %v278
  %v304 = vadd.f32 %v39, %v281
  %v305 = vadd.f32 %v40, %v286
  %v306 = vadd.f32 %v41, %v289
  %v307 = vadd.f32 %v42, %v294
  %308 = vst [vmem:[#allocation2] sm:$0xff] %v299
  %309 = vst [vmem:[#allocation2 + $0x8] sm:$0xff] %v300
  %310 = vst [vmem:[#allocation2 + $0x10] sm:$0xff] %v301
  %311 = vst [vmem:[#allocation2 + $0x18] sm:$0xff] %v302
  %312 = vst [vmem:[#allocation2 + $0x20] sm:$0xff] %v303
  %313 = vst [vmem:[#allocation2 + $0x28] sm:$0xff] %v304
  %314 = vst [vmem:[#allocation2 + $0x30] sm:$0xff] %v305
  %315 = vst [vmem:[#allocation2 + $0x38] sm:$0xff] %v306
  %316 = vst [vmem:[#allocation2 + $0x40] sm:$0xff] %v307
  %v317 = vld [vmem:[#allocation2] sm:$0xff]
  %v318 = vld [vmem:[#allocation2 + $0x8] sm:$0xff]
  %v319 = vld [vmem:[#allocation2 + $0x10] sm:$0xff]
  %v320 = vld [vmem:[#allocation2 + $0x18] sm:$0xff]
  %v321 = vld [vmem:[#allocation2 + $0x20] sm:$0xff]
  %v322 = vld [vmem:[#allocation2 + $0x28] sm:$0xff]
  %v323 = vld [vmem:[#allocation2 + $0x30] sm:$0xff]
  %v324 = vld [vmem:[#allocation2 + $0x38] sm:$0xff]
  %v325 = vld [vmem:[#allocation2 + $0x40] sm:$0xff]
  %v326 = vld [vmem:[%s1] sm:$0xff]
  %v327 = vld [vmem:[%s1 + $0x8] sm:$0xff]
  %v328 = vld [vmem:[%s1 + $0x10] sm:$0xff]
  %v329 = vld [vmem:[%s1 + $0x18] sm:$0xff]
  %v330 = vld [vmem:[%s1 + $0x20] sm:$0xff]
  %v331 = vld [vmem:[%s1 + $0x28] sm:$0xff]
  %v332 = vld [vmem:[%s1 + $0x30] sm:$0xff]
  %v333 = vld [vmem:[%s1 + $0x38] sm:$0xff]
  %v334 = vld [vmem:[%s1 + $0x40] sm:$0xff]
  %v335 = vld [vmem:[%s3] sm:$0xf]
  %v336 = vld [vmem:[%s3 + $0x4] sm:$0xf]
  %v337 = vld [vmem:[%s3 + $0x8] sm:$0xf]
  %v338 = vld [vmem:[%s3 + $0xc] sm:$0xf]
  %v339 = vld [vmem:[%s3 + $0x10] sm:$0xf]
  %v340 = vld [vmem:[%s3 + $0x14] sm:$0xf]
  %v341 = vld [vmem:[%s3 + $0x18] sm:$0xf]
  %v342 = vld [vmem:[%s3 + $0x1c] sm:$0xf]
  %v343 = vld [vmem:[%s3 + $0x20] sm:$0xf]
  %v344 = vld [vmem:[%s3 + $0x24] sm:$0xf]
  %v345 = vld [vmem:[%s3 + $0x28] sm:$0xf]
  %v346 = vld [vmem:[%s3 + $0x2c] sm:$0xf]
  %v347 = vld [vmem:[%s3 + $0x30] sm:$0xf]
  %v348 = vld [vmem:[%s3 + $0x34] sm:$0xf]
  %v349 = vld [vmem:[%s3 + $0x38] sm:$0xf]
  %v350 = vld [vmem:[%s3 + $0x3c] sm:$0xf]
  %v351 = vld [vmem:[%s3 + $0x40] sm:$0xf]
  %v352 = vld [vmem:[%s3 + $0x44] sm:$0xf]
  %v353 = vld [vmem:[%s3 + $0x48] sm:$0xf]
  %v354 = vld [vmem:[%s3 + $0x4c] sm:$0xf]
  %v355 = vld [vmem:[%s3 + $0x50] sm:$0xf]
  %v356 = vld [vmem:[%s3 + $0x54] sm:$0xf]
  %v357 = vld [vmem:[%s3 + $0x58] sm:$0xf]
  %v358 = vld [vmem:[%s3 + $0x5c] sm:$0xf]
  %v359 = vld [vmem:[%s3 + $0x60] sm:$0xf]
  %v360 = vld [vmem:[%s3 + $0x64] sm:$0xf]
  %v361 = vld [vmem:[%s3 + $0x68] sm:$0xf]
  %v362 = vld [vmem:[%s3 + $0x6c] sm:$0xf]
  %v363 = vld [vmem:[%s3 + $0x70] sm:$0xf]
  %v364 = vld [vmem:[%s3 + $0x74] sm:$0xf]
  %v365 = vld [vmem:[%s3 + $0x78] sm:$0xf]
  %v366 = vld [vmem:[%s3 + $0x7c] sm:$0xf]
  %v376 = vunpack.c.l.b16 %v326
  %v377 = vunpack.c.h.b16 %v326
  %v378 = vunpack.c.l.b16 %v327
  %v379 = vunpack.c.h.b16 %v327
  %v380 = vunpack.c.l.b16 %v328
  %v381 = vunpack.c.h.b16 %v328
  %v382 = vunpack.c.l.b16 %v329
  %v383 = vunpack.c.h.b16 %v329
  %v384 = vunpack.c.l.b16 %v330
  %v385 = vunpack.c.h.b16 %v330
  %v386 = vunpack.c.l.b16 %v331
  %v387 = vunpack.c.h.b16 %v331
  %v388 = vunpack.c.l.b16 %v332
  %v389 = vunpack.c.h.b16 %v332
  %v390 = vunpack.c.l.b16 %v333
  %v391 = vunpack.c.h.b16 %v333
  %v392 = vunpack.c.l.b16 %v334
  %v393 = vunpack.c.h.b16 %v334
  %v394 = vpack.c.b16 %v378, %v376
  %v395 = vpack.c.b16 %v379, %v377
  %v396 = vpack.c.b16 %v382, %v380
  %v397 = vpack.c.b16 %v383, %v381
  %v398 = vpack.c.b16 %v386, %v384
  %v399 = vpack.c.b16 %v387, %v385
  %v400 = vpack.c.b16 %v390, %v388
  %v401 = vpack.c.b16 %v391, %v389
  %v402 = vpack.c.b16 %v392, %v392
  %v403 = vpack.c.b16 %v393, %v393
  %v446 = vunpack.c.l.b16 %v335
  %v447 = vunpack.c.l.b16 %v336
  %v448 = vunpack.c.l.b16 %v337
  %v449 = vunpack.c.l.b16 %v338
  %v450 = vunpack.c.l.b16 %v339
  %v451 = vunpack.c.l.b16 %v340
  %v452 = vunpack.c.l.b16 %v341
  %v453 = vunpack.c.l.b16 %v342
  %v454 = vunpack.c.l.b16 %v343
  %v455 = vunpack.c.l.b16 %v344
  %v456 = vunpack.c.l.b16 %v345
  %v457 = vunpack.c.l.b16 %v346
  %v458 = vunpack.c.l.b16 %v347
  %v459 = vunpack.c.l.b16 %v348
  %v460 = vunpack.c.l.b16 %v349
  %v461 = vunpack.c.l.b16 %v350
  %v462 = vunpack.c.l.b16 %v351
  %v463 = vunpack.c.l.b16 %v352
  %v464 = vunpack.c.l.b16 %v353
  %v465 = vunpack.c.l.b16 %v354
  %v466 = vunpack.c.l.b16 %v355
  %v467 = vunpack.c.l.b16 %v356
  %v468 = vunpack.c.l.b16 %v357
  %v469 = vunpack.c.l.b16 %v358
  %v470 = vunpack.c.l.b16 %v359
  %v471 = vunpack.c.l.b16 %v360
  %v472 = vunpack.c.l.b16 %v361
  %v473 = vunpack.c.l.b16 %v362
  %v474 = vunpack.c.l.b16 %v363
  %v475 = vunpack.c.l.b16 %v364
  %v476 = vunpack.c.l.b16 %v365
  %v477 = vunpack.c.l.b16 %v366
  %v478 = vpack.c.b16 %v447, %v446
  %v479 = vpack.c.b16 %v449, %v448
  %v480 = vpack.c.b16 %v451, %v450
  %v481 = vpack.c.b16 %v453, %v452
  %v482 = vpack.c.b16 %v455, %v454
  %v483 = vpack.c.b16 %v457, %v456
  %v484 = vpack.c.b16 %v459, %v458
  %v485 = vpack.c.b16 %v461, %v460
  %v486 = vpack.c.b16 %v463, %v462
  %v487 = vpack.c.b16 %v465, %v464
  %v488 = vpack.c.b16 %v467, %v466
  %v489 = vpack.c.b16 %v469, %v468
  %v490 = vpack.c.b16 %v471, %v470
  %v491 = vpack.c.b16 %v473, %v472
  %v492 = vpack.c.b16 %v475, %v474
  %v493 = vpack.c.b16 %v477, %v476
  %510 = vmatprep.subr.bf16.mxu0 0
  %511 = vmatpush1.bf16.msra.mxu0 %v485
  %512 = vmatprep.subr.bf16.mxu0 0
  %513 = vmatpush1.bf16.msra.mxu0 %v484
  %514 = vmatprep.subr.bf16.mxu0 0
  %515 = vmatpush1.bf16.msra.mxu0 %v483
  %516 = vmatprep.subr.bf16.mxu0 0
  %517 = vmatpush1.bf16.msra.mxu0 %v482
  %518 = vmatprep.subr.bf16.mxu0 0
  %519 = vmatpush1.bf16.msra.mxu0 %v481
  %520 = vmatprep.subr.bf16.mxu0 0
  %521 = vmatpush1.bf16.msra.mxu0 %v480
  %522 = vmatprep.subr.bf16.mxu0 0
  %523 = vmatpush1.bf16.msra.mxu0 %v479
  %524 = vmatprep.subr.bf16.mxu0 0
  %525 = vmatpush1.bf16.msra.mxu0 %v478
  %526 = vmatprep.subr.bf16.mxu0 0
  %527 = vmatpush2.bf16.msra.mxu0 %v493
  %528 = vmatprep.subr.bf16.mxu0 0
  %529 = vmatpush2.bf16.msra.mxu0 %v492
  %530 = vmatprep.subr.bf16.mxu0 0
  %531 = vmatpush2.bf16.msra.mxu0 %v491
  %532 = vmatprep.subr.bf16.mxu0 0
  %533 = vmatpush2.bf16.msra.mxu0 %v490
  %534 = vmatprep.subr.bf16.mxu0 0
  %535 = vmatpush2.bf16.msra.mxu0 %v489
  %536 = vmatprep.subr.bf16.mxu0 0
  %537 = vmatpush2.bf16.msra.mxu0 %v488
  %538 = vmatprep.subr.bf16.mxu0 0
  %539 = vmatpush2.bf16.msra.mxu0 %v487
  %540 = vmatprep.subr.bf16.mxu0 0
  %541 = vmatpush2.bf16.msra.mxu0 %v486
  %542 = vmatprep.mubr.bf16.mxu0 %v395
  %543 = vmatmul.mubr.bf16.gmra.mxu0 %v394
  %v544 = vpop.f32.mrf.mxu0
  %v545 = vadd.f32 0.0, %v544
  %v546 = vpop.f32.mrf.mxu0
  %v547 = vpop.f32.mrf.mxu0
  %v548 = vadd.f32 0.0, %v547
  %v549 = vpop.f32.mrf.mxu0
  %550 = vmatprep.mubr.bf16.mxu0 %v397
  %551 = vmatmul.mubr.bf16.gmra.mxu0 %v396
  %v552 = vpop.f32.mrf.mxu0
  %v553 = vadd.f32 0.0, %v552
  %v554 = vpop.f32.mrf.mxu0
  %v555 = vpop.f32.mrf.mxu0
  %v556 = vadd.f32 0.0, %v555
  %v557 = vpop.f32.mrf.mxu0
  %558 = vmatprep.mubr.bf16.mxu0 %v399
  %559 = vmatmul.mubr.bf16.gmra.mxu0 %v398
  %v560 = vpop.f32.mrf.mxu0
  %v561 = vadd.f32 0.0, %v560
  %v562 = vpop.f32.mrf.mxu0
  %v563 = vpop.f32.mrf.mxu0
  %v564 = vadd.f32 0.0, %v563
  %v565 = vpop.f32.mrf.mxu0
  %566 = vmatprep.mubr.bf16.mxu0 %v401
  %567 = vmatmul.mubr.bf16.gmra.mxu0 %v400
  %v568 = vpop.f32.mrf.mxu0
  %v569 = vadd.f32 0.0, %v568
  %v570 = vpop.f32.mrf.mxu0
  %v571 = vpop.f32.mrf.mxu0
  %v572 = vadd.f32 0.0, %v571
  %v573 = vpop.f32.mrf.mxu0
  %574 = vmatprep.mubr.bf16.mxu0 %v403
  %575 = vmatmul.mubr.bf16.gmra.mxu0 %v402
  %v576 = vpop.f32.mrf.mxu0
  %v577 = vadd.f32 0.0, %v576
  %v578 = vpop.f32.mrf.mxu0
  %v579 = vpop.f32.mrf.mxu0
  %v580 = vpop.f32.mrf.mxu0
  %581 = vdwg.mxu0
  %v582 = vadd.f32 %v317, %v545
  %v583 = vadd.f32 %v318, %v548
  %v584 = vadd.f32 %v319, %v553
  %v585 = vadd.f32 %v320, %v556
  %v586 = vadd.f32 %v321, %v561
  %v587 = vadd.f32 %v322, %v564
  %v588 = vadd.f32 %v323, %v569
  %v589 = vadd.f32 %v324, %v572
  %v590 = vadd.f32 %v325, %v577
  %591 = vst [vmem:[#allocation2] sm:$0xff] %v582
  %592 = vst [vmem:[#allocation2 + $0x8] sm:$0xff] %v583
  %593 = vst [vmem:[#allocation2 + $0x10] sm:$0xff] %v584
  %594 = vst [vmem:[#allocation2 + $0x18] sm:$0xff] %v585
  %595 = vst [vmem:[#allocation2 + $0x20] sm:$0xff] %v586
  %596 = vst [vmem:[#allocation2 + $0x28] sm:$0xff] %v587
  %597 = vst [vmem:[#allocation2 + $0x30] sm:$0xff] %v588
  %598 = vst [vmem:[#allocation2 + $0x38] sm:$0xff] %v589
  %599 = vst [vmem:[#allocation2 + $0x40] sm:$0xff] %v590
  // Predicated region
  $region26: #{decoder_forward.7} parent=0 // pred_check
    %p600 = pneg %p21
  $region27: #{decoder_forward.7} parent=0 // pred_check_branch
    %602 = sbr.rel (%p600) target = $region29
  $region28: #{decoder_forward.7} parent=0 // pred_region
    %v603 = vld [vmem:[#allocation2] sm:$0xff]
    %v604 = vld [vmem:[#allocation2 + $0x8] sm:$0xff]
    %v605 = vld [vmem:[#allocation2 + $0x10] sm:$0xff]
    %v606 = vld [vmem:[#allocation2 + $0x18] sm:$0xff]
    %v607 = vld [vmem:[#allocation2 + $0x20] sm:$0xff]
    %v608 = vld [vmem:[#allocation2 + $0x28] sm:$0xff]
    %v609 = vld [vmem:[#allocation2 + $0x30] sm:$0xff]
    %v610 = vld [vmem:[#allocation2 + $0x38] sm:$0xff]
    %v611 = vld [vmem:[#allocation2 + $0x40] sm:$0xff]
    %v612 = vld [vmem:[%s4] sm:$0x1]
    %v614 = vlaneseq
    %v615 = vshrl.u32 %v614, 7
    %v616 = vsub.s32 0, %v615
    %v617 = vrot.slane %v612, %v616
    %v619 = vadd.f32 %v603, %v617
    %v620 = vadd.f32 %v604, %v617
    %v621 = vadd.f32 %v605, %v617
    %v622 = vadd.f32 %v606, %v617
    %v623 = vadd.f32 %v607, %v617
    %v624 = vadd.f32 %v608, %v617
    %v625 = vadd.f32 %v609, %v617
    %v626 = vadd.f32 %v610, %v617
    %v627 = vadd.f32 %v611, %v617
    %v628 = vmax.f32 %v619, 0.0
    %v629 = vmax.f32 %v620, 0.0
    %v630 = vmax.f32 %v621, 0.0
    %v631 = vmax.f32 %v622, 0.0
    %v632 = vmax.f32 %v623, 0.0
    %v633 = vmax.f32 %v624, 0.0
    %v634 = vmax.f32 %v625, 0.0
    %v635 = vmax.f32 %v626, 0.0
    %v636 = vmax.f32 %v627, 0.0
    %v637 = vpack.c.bf16 %v629, %v628
    %v638 = vpack.c.bf16 %v631, %v630
    %v639 = vpack.c.bf16 %v633, %v632
    %v640 = vpack.c.bf16 %v635, %v634
    %v641 = vpack.c.bf16 %v636, %v636
    %v647 = vunpack.c.l.b16 %v637
    %v648 = vunpack.c.h.b16 %v637
    %v649 = vunpack.c.l.b16 %v638
    %v650 = vunpack.c.h.b16 %v638
    %v651 = vunpack.c.l.b16 %v639
    %v652 = vunpack.c.h.b16 %v639
    %v653 = vunpack.c.l.b16 %v640
    %v654 = vunpack.c.h.b16 %v640
    %v655 = vunpack.c.l.b16 %v641
    %v656 = vpack.c.b16 %v647, %v647
    %v657 = vpack.c.b16 %v648, %v648
    %v658 = vpack.c.b16 %v649, %v649
    %v659 = vpack.c.b16 %v650, %v650
    %v660 = vpack.c.b16 %v651, %v651
    %v661 = vpack.c.b16 %v652, %v652
    %v662 = vpack.c.b16 %v653, %v653
    %v663 = vpack.c.b16 %v654, %v654
    %v664 = vpack.c.b16 %v655, %v655
    %674 = vst [vmem:[%s5] sm:$0xf] %v656
    %675 = vst [vmem:[%s5 + $0x4] sm:$0xf] %v657
    %676 = vst [vmem:[%s5 + $0x8] sm:$0xf] %v658
    %677 = vst [vmem:[%s5 + $0xc] sm:$0xf] %v659
    %678 = vst [vmem:[%s5 + $0x10] sm:$0xf] %v660
    %679 = vst [vmem:[%s5 + $0x14] sm:$0xf] %v661
    %680 = vst [vmem:[%s5 + $0x18] sm:$0xf] %v662
    %681 = vst [vmem:[%s5 + $0x1c] sm:$0xf] %v663
    %682 = vst [vmem:[%s5 + $0x20] sm:$0xf] %v664
  $region29: #{decoder_forward.7} parent=0 // pred_fallthru
    _
  // Predicated region
  $region30: #{decoder_forward.7} parent=0 // pred_check
    _
  $region31: #{decoder_forward.7} parent=0 // pred_check_branch
    %684 = sbr.rel (0) target = $region33
  $region32: #{decoder_forward.7} parent=0 // pred_region
    _
  $region33: #{decoder_forward.7} parent=0 // pred_fallthru
    _
  // Predicated region
  $region34: #{decoder_forward.7} parent=0 // pred_check
    _
  $region35: #{decoder_forward.7} parent=0 // pred_check_branch
    %686 = sbr.rel (0) target = $region37
  $region36: #{decoder_forward.7} parent=0 // pred_region
    _
  $region37: #{decoder_forward.7} parent=0 // pred_fallthru
    _

// kernel: decoder_forward.10
$region0: #{decoder_forward.10}
  #allocation0 [shape = 'u32[]', space=smem, size = 0x4, offset = 0x4, fixed_abs, tag = 'smem constant byte address 0x4 - core index']
  #allocation1 [shape = 'u32[144,128]{1,0:T(1,128)}', space=vmem, size = 0x12000, scoped, tag = 'internal scratch']
  #allocation2 [shape = 'f32[72,128]{1,0:T(8,128)}', space=vmem, size = 0x9000, scoped, tag = 'scratch operand']
  %s0 = inlined_call_operand.vmem [shape: bf16[72,128], index: 0, kind: input, shape index: {}]
  %s1 = inlined_call_operand.vmem [shape: bf16[72,128], index: 1, kind: input, shape index: {}]
  %s2 = inlined_call_operand.vmem [shape: bf16[128,128], index: 2, kind: input, shape index: {}]
  %s3 = inlined_call_operand.vmem [shape: bf16[128,128], index: 3, kind: input, shape index: {}]
  %s4 = inlined_call_operand.vmem [shape: f32[1,128], index: 4, kind: input, shape index: {}]
  %s5 = inlined_call_operand.vmem [shape: bf16[72,128], index: 5, kind: output, shape index: {}]
  %s6 = sld [smem:[#allocation0]]
  $region38: #{decoder_forward.10} parent=0
    _
  %s8 = ssub.s32 1, %s6
  %s9 = scalar_select 0, %s8, %s6
  // Predicated region
  $region2: #{decoder_forward.10} parent=0 // pred_check
    _
  $region3: #{decoder_forward.10} parent=0 // pred_check_branch
    %11 = sbr.rel (0) target = $region5
  $region4: #{decoder_forward.10} parent=0 // pred_region
    _
  $region5: #{decoder_forward.10} parent=0 // pred_fallthru
    _
  // Predicated region
  $region6: #{decoder_forward.10} parent=0 // pred_check
    _
  $region7: #{decoder_forward.10} parent=0 // pred_check_branch
    %13 = sbr.rel (0) target = $region9
  $region8: #{decoder_forward.10} parent=0 // pred_region
    _
  $region9: #{decoder_forward.10} parent=0 // pred_fallthru
    _
  // Predicated region
  $region10: #{decoder_forward.10} parent=0 // pred_check
    _
  $region11: #{decoder_forward.10} parent=0 // pred_check_branch
    %15 = sbr.rel (0) target = $region13
  $region12: #{decoder_forward.10} parent=0 // pred_region
    _
  $region13: #{decoder_forward.10} parent=0 // pred_fallthru
    _
  // Predicated region
  $region14: #{decoder_forward.10} parent=0 // pred_check
    _
  $region15: #{decoder_forward.10} parent=0 // pred_check_branch
    %17 = sbr.rel (0) target = $region17
  $region16: #{decoder_forward.10} parent=0 // pred_region
    _
  $region17: #{decoder_forward.10} parent=0 // pred_fallthru
    _
  // Predicated region
  $region18: #{decoder_forward.10} parent=0 // pred_check
    _
  $region19: #{decoder_forward.10} parent=0 // pred_check_branch
    %19 = sbr.rel (0) target = $region21
  $region20: #{decoder_forward.10} parent=0 // pred_region
    _
  $region21: #{decoder_forward.10} parent=0 // pred_fallthru
    _
  %p21 = scmp.eq.s32.totalorder 0, 0
  // Predicated region
  $region22: #{decoder_forward.10} parent=0 // pred_check
    %p22 = pneg %p21
  $region23: #{decoder_forward.10} parent=0 // pred_check_branch
    %24 = sbr.rel (%p22) target = $region25
  $region24: #{decoder_forward.10} parent=0 // pred_region
    %25 = vst [vmem:[#allocation2] sm:$0xff] 0.0
    %26 = vst [vmem:[#allocation2 + $0x8] sm:$0xff] 0.0
    %27 = vst [vmem:[#allocation2 + $0x10] sm:$0xff] 0.0
    %28 = vst [vmem:[#allocation2 + $0x18] sm:$0xff] 0.0
    %29 = vst [vmem:[#allocation2 + $0x20] sm:$0xff] 0.0
    %30 = vst [vmem:[#allocation2 + $0x28] sm:$0xff] 0.0
    %31 = vst [vmem:[#allocation2 + $0x30] sm:$0xff] 0.0
    %32 = vst [vmem:[#allocation2 + $0x38] sm:$0xff] 0.0
    %33 = vst [vmem:[#allocation2 + $0x40] sm:$0xff] 0.0
  $region25: #{decoder_forward.10} parent=0 // pred_fallthru
    _
  %v34 = vld [vmem:[#allocation2] sm:$0xff]
  %v35 = vld [vmem:[#allocation2 + $0x8] sm:$0xff]
  %v36 = vld [vmem:[#allocation2 + $0x10] sm:$0xff]
  %v37 = vld [vmem:[#allocation2 + $0x18] sm:$0xff]
  %v38 = vld [vmem:[#allocation2 + $0x20] sm:$0xff]
  %v39 = vld [vmem:[#allocation2 + $0x28] sm:$0xff]
  %v40 = vld [vmem:[#allocation2 + $0x30] sm:$0xff]
  %v41 = vld [vmem:[#allocation2 + $0x38] sm:$0xff]
  %v42 = vld [vmem:[#allocation2 + $0x40] sm:$0xff]
  %v43 = vld [vmem:[%s0] sm:$0xf]
  %v44 = vld [vmem:[%s0 + $0x4] sm:$0xf]
  %v45 = vld [vmem:[%s0 + $0x8] sm:$0xf]
  %v46 = vld [vmem:[%s0 + $0xc] sm:$0xf]
  %v47 = vld [vmem:[%s0 + $0x10] sm:$0xf]
  %v48 = vld [vmem:[%s0 + $0x14] sm:$0xf]
  %v49 = vld [vmem:[%s0 + $0x18] sm:$0xf]
  %v50 = vld [vmem:[%s0 + $0x1c] sm:$0xf]
  %v51 = vld [vmem:[%s0 + $0x20] sm:$0xf]
  %v52 = vld [vmem:[%s2] sm:$0xf]
  %v53 = vld [vmem:[%s2 + $0x4] sm:$0xf]
  %v54 = vld [vmem:[%s2 + $0x8] sm:$0xf]
  %v55 = vld [vmem:[%s2 + $0xc] sm:$0xf]
  %v56 = vld [vmem:[%s2 + $0x10] sm:$0xf]
  %v57 = vld [vmem:[%s2 + $0x14] sm:$0xf]
  %v58 = vld [vmem:[%s2 + $0x18] sm:$0xf]
  %v59 = vld [vmem:[%s2 + $0x1c] sm:$0xf]
  %v60 = vld [vmem:[%s2 + $0x20] sm:$0xf]
  %v61 = vld [vmem:[%s2 + $0x24] sm:$0xf]
  %v62 = vld [vmem:[%s2 + $0x28] sm:$0xf]
  %v63 = vld [vmem:[%s2 + $0x2c] sm:$0xf]
  %v64 = vld [vmem:[%s2 + $0x30] sm:$0xf]
  %v65 = vld [vmem:[%s2 + $0x34] sm:$0xf]
  %v66 = vld [vmem:[%s2 + $0x38] sm:$0xf]
  %v67 = vld [vmem:[%s2 + $0x3c] sm:$0xf]
  %v77 = vunpack.c.l.b16 %v43
  %v78 = vunpack.c.l.b16 %v44
  %v79 = vunpack.c.l.b16 %v45
  %v80 = vunpack.c.l.b16 %v46
  %v81 = vunpack.c.l.b16 %v47
  %v82 = vunpack.c.l.b16 %v48
  %v83 = vunpack.c.l.b16 %v49
  %v84 = vunpack.c.l.b16 %v50
  %v85 = vunpack.c.l.b16 %v51
  %v86 = vpack.c.b16 %v78, %v77
  %v87 = vpack.c.b16 %v80, %v79
  %v88 = vpack.c.b16 %v82, %v81
  %v89 = vpack.c.b16 %v84, %v83
  %v90 = vpack.c.b16 %v85, %v85
  %v112 = vunpack.c.l.b16 %v52
  %v113 = vunpack.c.l.b16 %v53
  %v114 = vunpack.c.l.b16 %v54
  %v115 = vunpack.c.l.b16 %v55
  %v116 = vunpack.c.l.b16 %v56
  %v117 = vunpack.c.l.b16 %v57
  %v118 = vunpack.c.l.b16 %v58
  %v119 = vunpack.c.l.b16 %v59
  %v120 = vunpack.c.l.b16 %v60
  %v121 = vunpack.c.l.b16 %v61
  %v122 = vunpack.c.l.b16 %v62
  %v123 = vunpack.c.l.b16 %v63
  %v124 = vunpack.c.l.b16 %v64
  %v125 = vunpack.c.l.b16 %v65
  %v126 = vunpack.c.l.b16 %v66
  %v127 = vunpack.c.l.b16 %v67
  %v128 = vpack.c.b16 %v113, %v112
  %v129 = vpack.c.b16 %v115, %v114
  %v130 = vpack.c.b16 %v117, %v116
  %v131 = vpack.c.b16 %v119, %v118
  %v132 = vpack.c.b16 %v121, %v120
  %v133 = vpack.c.b16 %v123, %v122
  %v134 = vpack.c.b16 %v125, %v124
  %v135 = vpack.c.b16 %v127, %v126
  %144 = vmatprep.subr.bf16.mxu0 0
  %145 = vmatpush1.bf16.msra.mxu0 %v135
  %146 = vmatprep.subr.bf16.mxu0 0
  %147 = vmatpush1.bf16.msra.mxu0 %v134
  %148 = vmatprep.subr.bf16.mxu0 0
  %149 = vmatpush1.bf16.msra.mxu0 %v133
  %150 = vmatprep.subr.bf16.mxu0 0
  %151 = vmatpush1.bf16.msra.mxu0 %v132
  %152 = vmatprep.subr.bf16.mxu0 0
  %153 = vmatpush1.bf16.msra.mxu0 %v131
  %154 = vmatprep.subr.bf16.mxu0 0
  %155 = vmatpush1.bf16.msra.mxu0 %v130
  %156 = vmatprep.subr.bf16.mxu0 0
  %157 = vmatpush1.bf16.msra.mxu0 %v129
  %158 = vmatprep.subr.bf16.mxu0 0
  %159 = vmatpush1.bf16.msra.mxu0 %v128
  %160 = vmatprep.subr.bf16.mxu0 0
  %161 = vmatpush2.bf16.msra.mxu0 0
  %162 = vmatprep.subr.bf16.mxu0 0
  %163 = vmatpush2.bf16.msra.mxu0 0
  %164 = vmatprep.subr.bf16.mxu0 0
  %165 = vmatpush2.bf16.msra.mxu0 0
  %166 = vmatprep.subr.bf16.mxu0 0
  %167 = vmatpush2.bf16.msra.mxu0 0
  %168 = vmatprep.subr.bf16.mxu0 0
  %169 = vmatpush2.bf16.msra.mxu0 0
  %170 = vmatprep.subr.bf16.mxu0 0
  %171 = vmatpush2.bf16.msra.mxu0 0
  %172 = vmatprep.subr.bf16.mxu0 0
  %173 = vmatpush2.bf16.msra.mxu0 0
  %174 = vmatprep.subr.bf16.mxu0 0
  %175 = vmatpush2.bf16.msra.mxu0 0
  %176 = vmatprep.mubr.bf16.mxu0 0
  %177 = vmatmul.mubr.bf16.gmra.mxu0 %v86
  %v178 = vpop.f32.mrf.mxu0
  %v179 = vadd.f32 0.0, %v178
  %v180 = vpop.f32.mrf.mxu0
  %v181 = vpop.f32.mrf.mxu0
  %v182 = vadd.f32 0.0, %v181
  %v183 = vpop.f32.mrf.mxu0
  %184 = vmatprep.mubr.bf16.mxu0 0
  %185 = vmatmul.mubr.bf16.gmra.mxu0 %v87
  %v186 = vpop.f32.mrf.mxu0
  %v187 = vadd.f32 0.0, %v186
  %v188 = vpop.f32.mrf.mxu0
  %v189 = vpop.f32.mrf.mxu0
  %v190 = vadd.f32 0.0, %v189
  %v191 = vpop.f32.mrf.mxu0
  %192 = vmatprep.mubr.bf16.mxu0 0
  %193 = vmatmul.mubr.bf16.gmra.mxu0 %v88
  %v194 = vpop.f32.mrf.mxu0
  %v195 = vadd.f32 0.0, %v194
  %v196 = vpop.f32.mrf.mxu0
  %v197 = vpop.f32.mrf.mxu0
  %v198 = vadd.f32 0.0, %v197
  %v199 = vpop.f32.mrf.mxu0
  %200 = vmatprep.mubr.bf16.mxu0 0
  %201 = vmatmul.mubr.bf16.gmra.mxu0 %v89
  %v202 = vpop.f32.mrf.mxu0
  %v203 = vadd.f32 0.0, %v202
  %v204 = vpop.f32.mrf.mxu0
  %v205 = vpop.f32.mrf.mxu0
  %v206 = vadd.f32 0.0, %v205
  %v207 = vpop.f32.mrf.mxu0
  %208 = vmatprep.mubr.bf16.mxu0 0
  %209 = vmatmul.mubr.bf16.gmra.mxu0 %v90
  %v210 = vpop.f32.mrf.mxu0
  %v211 = vadd.f32 0.0, %v210
  %v212 = vpop.f32.mrf.mxu0
  %v213 = vpop.f32.mrf.mxu0
  %v214 = vpop.f32.mrf.mxu0
  %215 = vdwg.mxu0
  %v216 = vadd.f32 %v34, %v179
  %v217 = vadd.f32 %v35, %v182
  %v218 = vadd.f32 %v36, %v187
  %v219 = vadd.f32 %v37, %v190
  %v220 = vadd.f32 %v38, %v195
  %v221 = vadd.f32 %v39, %v198
  %v222 = vadd.f32 %v40, %v203
  %v223 = vadd.f32 %v41, %v206
  %v224 = vadd.f32 %v42, %v211
  %225 = vst [vmem:[#allocation2] sm:$0xff] %v216
  %226 = vst [vmem:[#allocation2 + $0x8] sm:$0xff] %v217
  %227 = vst [vmem:[#allocation2 + $0x10] sm:$0xff] %v218
  %228 = vst [vmem:[#allocation2 + $0x18] sm:$0xff] %v219
  %229 = vst [vmem:[#allocation2 + $0x20] sm:$0xff] %v220
  %230 = vst [vmem:[#allocation2 + $0x28] sm:$0xff] %v221
  %231 = vst [vmem:[#allocation2 + $0x30] sm:$0xff] %v222
  %232 = vst [vmem:[#allocation2 + $0x38] sm:$0xff] %v223
  %233 = vst [vmem:[#allocation2 + $0x40] sm:$0xff] %v224
  %v234 = vld [vmem:[#allocation2] sm:$0xff]
  %v235 = vld [vmem:[#allocation2 + $0x8] sm:$0xff]
  %v236 = vld [vmem:[#allocation2 + $0x10] sm:$0xff]
  %v237 = vld [vmem:[#allocation2 + $0x18] sm:$0xff]
  %v238 = vld [vmem:[#allocation2 + $0x20] sm:$0xff]
  %v239 = vld [vmem:[#allocation2 + $0x28] sm:$0xff]
  %v240 = vld [vmem:[#allocation2 + $0x30] sm:$0xff]
  %v241 = vld [vmem:[#allocation2 + $0x38] sm:$0xff]
  %v242 = vld [vmem:[#allocation2 + $0x40] sm:$0xff]
  %v243 = vld [vmem:[%s1] sm:$0xf]
  %v244 = vld [vmem:[%s1 + $0x4] sm:$0xf]
  %v245 = vld [vmem:[%s1 + $0x8] sm:$0xf]
  %v246 = vld [vmem:[%s1 + $0xc] sm:$0xf]
  %v247 = vld [vmem:[%s1 + $0x10] sm:$0xf]
  %v248 = vld [vmem:[%s1 + $0x14] sm:$0xf]
  %v249 = vld [vmem:[%s1 + $0x18] sm:$0xf]
  %v250 = vld [vmem:[%s1 + $0x1c] sm:$0xf]
  %v251 = vld [vmem:[%s1 + $0x20] sm:$0xf]
  %v252 = vld [vmem:[%s3] sm:$0xf]
  %v253 = vld [vmem:[%s3 + $0x4] sm:$0xf]
  %v254 = vld [vmem:[%s3 + $0x8] sm:$0xf]
  %v255 = vld [vmem:[%s3 + $0xc] sm:$0xf]
  %v256 = vld [vmem:[%s3 + $0x10] sm:$0xf]
  %v257 = vld [vmem:[%s3 + $0x14] sm:$0xf]
  %v258 = vld [vmem:[%s3 + $0x18] sm:$0xf]
  %v259 = vld [vmem:[%s3 + $0x1c] sm:$0xf]
  %v260 = vld [vmem:[%s3 + $0x20] sm:$0xf]
  %v261 = vld [vmem:[%s3 + $0x24] sm:$0xf]
  %v262 = vld [vmem:[%s3 + $0x28] sm:$0xf]
  %v263 = vld [vmem:[%s3 + $0x2c] sm:$0xf]
  %v264 = vld [vmem:[%s3 + $0x30] sm:$0xf]
  %v265 = vld [vmem:[%s3 + $0x34] sm:$0xf]
  %v266 = vld [vmem:[%s3 + $0x38] sm:$0xf]
  %v267 = vld [vmem:[%s3 + $0x3c] sm:$0xf]
  %v277 = vunpack.c.l.b16 %v243
  %v278 = vunpack.c.l.b16 %v244
  %v279 = vunpack.c.l.b16 %v245
  %v280 = vunpack.c.l.b16 %v246
  %v281 = vunpack.c.l.b16 %v247
  %v282 = vunpack.c.l.b16 %v248
  %v283 = vunpack.c.l.b16 %v249
  %v284 = vunpack.c.l.b16 %v250
  %v285 = vunpack.c.l.b16 %v251
  %v286 = vpack.c.b16 %v278, %v277
  %v287 = vpack.c.b16 %v280, %v279
  %v288 = vpack.c.b16 %v282, %v281
  %v289 = vpack.c.b16 %v284, %v283
  %v290 = vpack.c.b16 %v285, %v285
  %v312 = vunpack.c.l.b16 %v252
  %v313 = vunpack.c.l.b16 %v253
  %v314 = vunpack.c.l.b16 %v254
  %v315 = vunpack.c.l.b16 %v255
  %v316 = vunpack.c.l.b16 %v256
  %v317 = vunpack.c.l.b16 %v257
  %v318 = vunpack.c.l.b16 %v258
  %v319 = vunpack.c.l.b16 %v259
  %v320 = vunpack.c.l.b16 %v260
  %v321 = vunpack.c.l.b16 %v261
  %v322 = vunpack.c.l.b16 %v262
  %v323 = vunpack.c.l.b16 %v263
  %v324 = vunpack.c.l.b16 %v264
  %v325 = vunpack.c.l.b16 %v265
  %v326 = vunpack.c.l.b16 %v266
  %v327 = vunpack.c.l.b16 %v267
  %v328 = vpack.c.b16 %v313, %v312
  %v329 = vpack.c.b16 %v315, %v314
  %v330 = vpack.c.b16 %v317, %v316
  %v331 = vpack.c.b16 %v319, %v318
  %v332 = vpack.c.b16 %v321, %v320
  %v333 = vpack.c.b16 %v323, %v322
  %v334 = vpack.c.b16 %v325, %v324
  %v335 = vpack.c.b16 %v327, %v326
  %344 = vmatprep.subr.bf16.mxu0 0
  %345 = vmatpush1.bf16.msra.mxu0 %v335
  %346 = vmatprep.subr.bf16.mxu0 0
  %347 = vmatpush1.bf16.msra.mxu0 %v334
  %348 = vmatprep.subr.bf16.mxu0 0
  %349 = vmatpush1.bf16.msra.mxu0 %v333
  %350 = vmatprep.subr.bf16.mxu0 0
  %351 = vmatpush1.bf16.msra.mxu0 %v332
  %352 = vmatprep.subr.bf16.mxu0 0
  %353 = vmatpush1.bf16.msra.mxu0 %v331
  %354 = vmatprep.subr.bf16.mxu0 0
  %355 = vmatpush1.bf16.msra.mxu0 %v330
  %356 = vmatprep.subr.bf16.mxu0 0
  %357 = vmatpush1.bf16.msra.mxu0 %v329
  %358 = vmatprep.subr.bf16.mxu0 0
  %359 = vmatpush1.bf16.msra.mxu0 %v328
  %360 = vmatprep.subr.bf16.mxu0 0
  %361 = vmatpush2.bf16.msra.mxu0 0
  %362 = vmatprep.subr.bf16.mxu0 0
  %363 = vmatpush2.bf16.msra.mxu0 0
  %364 = vmatprep.subr.bf16.mxu0 0
  %365 = vmatpush2.bf16.msra.mxu0 0
  %366 = vmatprep.subr.bf16.mxu0 0
  %367 = vmatpush2.bf16.msra.mxu0 0
  %368 = vmatprep.subr.bf16.mxu0 0
  %369 = vmatpush2.bf16.msra.mxu0 0
  %370 = vmatprep.subr.bf16.mxu0 0
  %371 = vmatpush2.bf16.msra.mxu0 0
  %372 = vmatprep.subr.bf16.mxu0 0
  %373 = vmatpush2.bf16.msra.mxu0 0
  %374 = vmatprep.subr.bf16.mxu0 0
  %375 = vmatpush2.bf16.msra.mxu0 0
  %376 = vmatprep.mubr.bf16.mxu0 0
  %377 = vmatmul.mubr.bf16.gmra.mxu0 %v286
  %v378 = vpop.f32.mrf.mxu0
  %v379 = vadd.f32 0.0, %v378
  %v380 = vpop.f32.mrf.mxu0
  %v381 = vpop.f32.mrf.mxu0
  %v382 = vadd.f32 0.0, %v381
  %v383 = vpop.f32.mrf.mxu0
  %384 = vmatprep.mubr.bf16.mxu0 0
  %385 = vmatmul.mubr.bf16.gmra.mxu0 %v287
  %v386 = vpop.f32.mrf.mxu0
  %v387 = vadd.f32 0.0, %v386
  %v388 = vpop.f32.mrf.mxu0
  %v389 = vpop.f32.mrf.mxu0
  %v390 = vadd.f32 0.0, %v389
  %v391 = vpop.f32.mrf.mxu0
  %392 = vmatprep.mubr.bf16.mxu0 0
  %393 = vmatmul.mubr.bf16.gmra.mxu0 %v288
  %v394 = vpop.f32.mrf.mxu0
  %v395 = vadd.f32 0.0, %v394
  %v396 = vpop.f32.mrf.mxu0
  %v397 = vpop.f32.mrf.mxu0
  %v398 = vadd.f32 0.0, %v397
  %v399 = vpop.f32.mrf.mxu0
  %400 = vmatprep.mubr.bf16.mxu0 0
  %401 = vmatmul.mubr.bf16.gmra.mxu0 %v289
  %v402 = vpop.f32.mrf.mxu0
  %v403 = vadd.f32 0.0, %v402
  %v404 = vpop.f32.mrf.mxu0
  %v405 = vpop.f32.mrf.mxu0
  %v406 = vadd.f32 0.0, %v405
  %v407 = vpop.f32.mrf.mxu0
  %408 = vmatprep.mubr.bf16.mxu0 0
  %409 = vmatmul.mubr.bf16.gmra.mxu0 %v290
  %v410 = vpop.f32.mrf.mxu0
  %v411 = vadd.f32 0.0, %v410
  %v412 = vpop.f32.mrf.mxu0
  %v413 = vpop.f32.mrf.mxu0
  %v414 = vpop.f32.mrf.mxu0
  %415 = vdwg.mxu0
  %v416 = vadd.f32 %v234, %v379
  %v417 = vadd.f32 %v235, %v382
  %v418 = vadd.f32 %v236, %v387
  %v419 = vadd.f32 %v237, %v390
  %v420 = vadd.f32 %v238, %v395
  %v421 = vadd.f32 %v239, %v398
  %v422 = vadd.f32 %v240, %v403
  %v423 = vadd.f32 %v241, %v406
  %v424 = vadd.f32 %v242, %v411
  %425 = vst [vmem:[#allocation2] sm:$0xff] %v416
  %426 = vst [vmem:[#allocation2 + $0x8] sm:$0xff] %v417
  %427 = vst [vmem:[#allocation2 + $0x10] sm:$0xff] %v418
  %428 = vst [vmem:[#allocation2 + $0x18] sm:$0xff] %v419
  %429 = vst [vmem:[#allocation2 + $0x20] sm:$0xff] %v420
  %430 = vst [vmem:[#allocation2 + $0x28] sm:$0xff] %v421
  %431 = vst [vmem:[#allocation2 + $0x30] sm:$0xff] %v422
  %432 = vst [vmem:[#allocation2 + $0x38] sm:$0xff] %v423
  %433 = vst [vmem:[#allocation2 + $0x40] sm:$0xff] %v424
  // Predicated region
  $region26: #{decoder_forward.10} parent=0 // pred_check
    %p434 = pneg %p21
  $region27: #{decoder_forward.10} parent=0 // pred_check_branch
    %436 = sbr.rel (%p434) target = $region29
  $region28: #{decoder_forward.10} parent=0 // pred_region
    %v437 = vld [vmem:[#allocation2] sm:$0xff]
    %v438 = vld [vmem:[#allocation2 + $0x8] sm:$0xff]
    %v439 = vld [vmem:[#allocation2 + $0x10] sm:$0xff]
    %v440 = vld [vmem:[#allocation2 + $0x18] sm:$0xff]
    %v441 = vld [vmem:[#allocation2 + $0x20] sm:$0xff]
    %v442 = vld [vmem:[#allocation2 + $0x28] sm:$0xff]
    %v443 = vld [vmem:[#allocation2 + $0x30] sm:$0xff]
    %v444 = vld [vmem:[#allocation2 + $0x38] sm:$0xff]
    %v445 = vld [vmem:[#allocation2 + $0x40] sm:$0xff]
    %v446 = vld [vmem:[%s4] sm:$0x1]
    %v448 = vlaneseq
    %v449 = vshrl.u32 %v448, 7
    %v450 = vsub.s32 0, %v449
    %v451 = vrot.slane %v446, %v450
    %v453 = vadd.f32 %v437, %v451
    %v454 = vadd.f32 %v438, %v451
    %v455 = vadd.f32 %v439, %v451
    %v456 = vadd.f32 %v440, %v451
    %v457 = vadd.f32 %v441, %v451
    %v458 = vadd.f32 %v442, %v451
    %v459 = vadd.f32 %v443, %v451
    %v460 = vadd.f32 %v444, %v451
    %v461 = vadd.f32 %v445, %v451
    %v462 = vmax.f32 %v453, 0.0
    %v463 = vmax.f32 %v454, 0.0
    %v464 = vmax.f32 %v455, 0.0
    %v465 = vmax.f32 %v456, 0.0
    %v466 = vmax.f32 %v457, 0.0
    %v467 = vmax.f32 %v458, 0.0
    %v468 = vmax.f32 %v459, 0.0
    %v469 = vmax.f32 %v460, 0.0
    %v470 = vmax.f32 %v461, 0.0
    %v471 = vpack.c.bf16 %v463, %v462
    %v472 = vpack.c.bf16 %v465, %v464
    %v473 = vpack.c.bf16 %v467, %v466
    %v474 = vpack.c.bf16 %v469, %v468
    %v475 = vpack.c.bf16 %v470, %v470
    %v481 = vunpack.c.l.b16 %v471
    %v482 = vunpack.c.h.b16 %v471
    %v483 = vunpack.c.l.b16 %v472
    %v484 = vunpack.c.h.b16 %v472
    %v485 = vunpack.c.l.b16 %v473
    %v486 = vunpack.c.h.b16 %v473
    %v487 = vunpack.c.l.b16 %v474
    %v488 = vunpack.c.h.b16 %v474
    %v489 = vunpack.c.l.b16 %v475
    %v490 = vpack.c.b16 %v481, %v481
    %v491 = vpack.c.b16 %v482, %v482
    %v492 = vpack.c.b16 %v483, %v483
    %v493 = vpack.c.b16 %v484, %v484
    %v494 = vpack.c.b16 %v485, %v485
    %v495 = vpack.c.b16 %v486, %v486
    %v496 = vpack.c.b16 %v487, %v487
    %v497 = vpack.c.b16 %v488, %v488
    %v498 = vpack.c.b16 %v489, %v489
    %508 = vst [vmem:[%s5] sm:$0xf] %v490
    %509 = vst [vmem:[%s5 + $0x4] sm:$0xf] %v491
    %510 = vst [vmem:[%s5 + $0x8] sm:$0xf] %v492
    %511 = vst [vmem:[%s5 + $0xc] sm:$0xf] %v493
    %512 = vst [vmem:[%s5 + $0x10] sm:$0xf] %v494
    %513 = vst [vmem:[%s5 + $0x14] sm:$0xf] %v495
    %514 = vst [vmem:[%s5 + $0x18] sm:$0xf] %v496
    %515 = vst [vmem:[%s5 + $0x1c] sm:$0xf] %v497
    %516 = vst [vmem:[%s5 + $0x20] sm:$0xf] %v498
  $region29: #{decoder_forward.10} parent=0 // pred_fallthru
    _
  // Predicated region
  $region30: #{decoder_forward.10} parent=0 // pred_check
    _
  $region31: #{decoder_forward.10} parent=0 // pred_check_branch
    %518 = sbr.rel (0) target = $region33
  $region32: #{decoder_forward.10} parent=0 // pred_region
    _
  $region33: #{decoder_forward.10} parent=0 // pred_fallthru
    _
  // Predicated region
  $region34: #{decoder_forward.10} parent=0 // pred_check
    _
  $region35: #{decoder_forward.10} parent=0 // pred_check_branch
    %520 = sbr.rel (0) target = $region37
  $region36: #{decoder_forward.10} parent=0 // pred_region
    _
  $region37: #{decoder_forward.10} parent=0 // pred_fallthru
    _

// kernel: decoder_forward.11
$region0: #{decoder_forward.11}
  #allocation0 [shape = 'u32[]', space=smem, size = 0x4, offset = 0x4, fixed_abs, tag = 'smem constant byte address 0x4 - core index']
  #allocation1 [shape = 'u32[144,128]{1,0:T(1,128)}', space=vmem, size = 0x12000, scoped, tag = 'internal scratch']
  #allocation2 [shape = 'f32[32,128]{1,0:T(8,128)}', space=vmem, size = 0x4000, scoped, tag = 'scratch operand']
  %s0 = inlined_call_operand.vmem [shape: bf16[32,128], index: 0, kind: input, shape index: {}]
  %s1 = inlined_call_operand.vmem [shape: bf16[128,128], index: 1, kind: input, shape index: {}]
  %s2 = inlined_call_operand.vmem [shape: f32[1,128], index: 2, kind: input, shape index: {}]
  %s3 = inlined_call_operand.hbm [shape: f32[32,128], index: 3, kind: output, shape index: {}]
  %s4 = sld [smem:[#allocation0]]
  $region30: #{decoder_forward.11} parent=0
    _
  %s6 = ssub.s32 1, %s4
  %s7 = scalar_select 0, %s6, %s4
  $region1: #{decoder_forward.11} parent=0
    #allocation3 [shape = 'u8[16384]{0}', space=vmem, size = 0x4000, scoped, tag = 'output window, operand 0, single buffered']
    #allocation4 [shape = 's32[1]{0}', space=sflag, size = 0x4, scoped, tag = 'scoped memory for decoder_forward.11']
    %8 = vsyncpa [#allocation4], 0
    // Predicated region
    $region2: #{decoder_forward.11} parent=1 // pred_check
      _
    $region3: #{decoder_forward.11} parent=1 // pred_check_branch
      %10 = sbr.rel (0) target = $region5
    $region4: #{decoder_forward.11} parent=1 // pred_region
      _
    $region5: #{decoder_forward.11} parent=1 // pred_fallthru
      _
    // Predicated region
    $region6: #{decoder_forward.11} parent=1 // pred_check
      _
    $region7: #{decoder_forward.11} parent=1 // pred_check_branch
      %12 = sbr.rel (0) target = $region9
    $region8: #{decoder_forward.11} parent=1 // pred_region
      _
    $region9: #{decoder_forward.11} parent=1 // pred_fallthru
      _
    // Predicated region
    $region10: #{decoder_forward.11} parent=1 // pred_check
      _
    $region11: #{decoder_forward.11} parent=1 // pred_check_branch
      %14 = sbr.rel (0) target = $region13
    $region12: #{decoder_forward.11} parent=1 // pred_region
      _
    $region13: #{decoder_forward.11} parent=1 // pred_fallthru
      _
    %p16 = scmp.eq.s32.totalorder 0, 0
    // Predicated region
    $region14: #{decoder_forward.11} parent=1 // pred_check
      %p17 = pneg %p16
    $region15: #{decoder_forward.11} parent=1 // pred_check_branch
      %19 = sbr.rel (%p17) target = $region17
    $region16: #{decoder_forward.11} parent=1 // pred_region
      %20 = vst [vmem:[#allocation2] sm:$0xff] 0.0
      %21 = vst [vmem:[#allocation2 + $0x8] sm:$0xff] 0.0
      %22 = vst [vmem:[#allocation2 + $0x10] sm:$0xff] 0.0
      %23 = vst [vmem:[#allocation2 + $0x18] sm:$0xff] 0.0
    $region17: #{decoder_forward.11} parent=1 // pred_fallthru
      _
    %v24 = vld [vmem:[#allocation2] sm:$0xff]
    %v25 = vld [vmem:[#allocation2 + $0x8] sm:$0xff]
    %v26 = vld [vmem:[#allocation2 + $0x10] sm:$0xff]
    %v27 = vld [vmem:[#allocation2 + $0x18] sm:$0xff]
    %v28 = vld [vmem:[%s0] sm:$0xf]
    %v29 = vld [vmem:[%s0 + $0x4] sm:$0xf]
    %v30 = vld [vmem:[%s0 + $0x8] sm:$0xf]
    %v31 = vld [vmem:[%s0 + $0xc] sm:$0xf]
    %v32 = vld [vmem:[%s1] sm:$0xf]
    %v33 = vld [vmem:[%s1 + $0x4] sm:$0xf]
    %v34 = vld [vmem:[%s1 + $0x8] sm:$0xf]
    %v35 = vld [vmem:[%s1 + $0xc] sm:$0xf]
    %v36 = vld [vmem:[%s1 + $0x10] sm:$0xf]
    %v37 = vld [vmem:[%s1 + $0x14] sm:$0xf]
    %v38 = vld [vmem:[%s1 + $0x18] sm:$0xf]
    %v39 = vld [vmem:[%s1 + $0x1c] sm:$0xf]
    %v40 = vld [vmem:[%s1 + $0x20] sm:$0xf]
    %v41 = vld [vmem:[%s1 + $0x24] sm:$0xf]
    %v42 = vld [vmem:[%s1 + $0x28] sm:$0xf]
    %v43 = vld [vmem:[%s1 + $0x2c] sm:$0xf]
    %v44 = vld [vmem:[%s1 + $0x30] sm:$0xf]
    %v45 = vld [vmem:[%s1 + $0x34] sm:$0xf]
    %v46 = vld [vmem:[%s1 + $0x38] sm:$0xf]
    %v47 = vld [vmem:[%s1 + $0x3c] sm:$0xf]
    %v52 = vunpack.c.l.b16 %v28
    %v53 = vunpack.c.l.b16 %v29
    %v54 = vunpack.c.l.b16 %v30
    %v55 = vunpack.c.l.b16 %v31
    %v56 = vpack.c.b16 %v53, %v52
    %v57 = vpack.c.b16 %v55, %v54
    %v76 = vunpack.c.l.b16 %v32
    %v77 = vunpack.c.l.b16 %v33
    %v78 = vunpack.c.l.b16 %v34
    %v79 = vunpack.c.l.b16 %v35
    %v80 = vunpack.c.l.b16 %v36
    %v81 = vunpack.c.l.b16 %v37
    %v82 = vunpack.c.l.b16 %v38
    %v83 = vunpack.c.l.b16 %v39
    %v84 = vunpack.c.l.b16 %v40
    %v85 = vunpack.c.l.b16 %v41
    %v86 = vunpack.c.l.b16 %v42
    %v87 = vunpack.c.l.b16 %v43
    %v88 = vunpack.c.l.b16 %v44
    %v89 = vunpack.c.l.b16 %v45
    %v90 = vunpack.c.l.b16 %v46
    %v91 = vunpack.c.l.b16 %v47
    %v92 = vpack.c.b16 %v77, %v76
    %v93 = vpack.c.b16 %v79, %v78
    %v94 = vpack.c.b16 %v81, %v80
    %v95 = vpack.c.b16 %v83, %v82
    %v96 = vpack.c.b16 %v85, %v84
    %v97 = vpack.c.b16 %v87, %v86
    %v98 = vpack.c.b16 %v89, %v88
    %v99 = vpack.c.b16 %v91, %v90
    %108 = vmatprep.subr.bf16.mxu0 0
    %109 = vmatpush1.bf16.msra.mxu0 %v99
    %110 = vmatprep.subr.bf16.mxu0 0
    %111 = vmatpush1.bf16.msra.mxu0 %v98
    %112 = vmatprep.subr.bf16.mxu0 0
    %113 = vmatpush1.bf16.msra.mxu0 %v97
    %114 = vmatprep.subr.bf16.mxu0 0
    %115 = vmatpush1.bf16.msra.mxu0 %v96
    %116 = vmatprep.subr.bf16.mxu0 0
    %117 = vmatpush1.bf16.msra.mxu0 %v95
    %118 = vmatprep.subr.bf16.mxu0 0
    %119 = vmatpush1.bf16.msra.mxu0 %v94
    %120 = vmatprep.subr.bf16.mxu0 0
    %121 = vmatpush1.bf16.msra.mxu0 %v93
    %122 = vmatprep.subr.bf16.mxu0 0
    %123 = vmatpush1.bf16.msra.mxu0 %v92
    %124 = vmatprep.subr.bf16.mxu0 0
    %125 = vmatpush2.bf16.msra.mxu0 0
    %126 = vmatprep.subr.bf16.mxu0 0
    %127 = vmatpush2.bf16.msra.mxu0 0
    %128 = vmatprep.subr.bf16.mxu0 0
    %129 = vmatpush2.bf16.msra.mxu0 0
    %130 = vmatprep.subr.bf16.mxu0 0
    %131 = vmatpush2.bf16.msra.mxu0 0
    %132 = vmatprep.subr.bf16.mxu0 0
    %133 = vmatpush2.bf16.msra.mxu0 0
    %134 = vmatprep.subr.bf16.mxu0 0
    %135 = vmatpush2.bf16.msra.mxu0 0
    %136 = vmatprep.subr.bf16.mxu0 0
    %137 = vmatpush2.bf16.msra.mxu0 0
    %138 = vmatprep.subr.bf16.mxu0 0
    %139 = vmatpush2.bf16.msra.mxu0 0
    %140 = vmatprep.mubr.bf16.mxu0 0
    %141 = vmatmul.mubr.bf16.gmra.mxu0 %v56
    %v142 = vpop.f32.mrf.mxu0
    %v143 = vadd.f32 0.0, %v142
    %v144 = vpop.f32.mrf.mxu0
    %v145 = vpop.f32.mrf.mxu0
    %v146 = vadd.f32 0.0, %v145
    %v147 = vpop.f32.mrf.mxu0
    %148 = vmatprep.mubr.bf16.mxu0 0
    %149 = vmatmul.mubr.bf16.gmra.mxu0 %v57
    %v150 = vpop.f32.mrf.mxu0
    %v151 = vadd.f32 0.0, %v150
    %v152 = vpop.f32.mrf.mxu0
    %v153 = vpop.f32.mrf.mxu0
    %v154 = vadd.f32 0.0, %v153
    %v155 = vpop.f32.mrf.mxu0
    %156 = vdwg.mxu0
    %v157 = vadd.f32 %v24, %v143
    %v158 = vadd.f32 %v25, %v146
    %v159 = vadd.f32 %v26, %v151
    %v160 = vadd.f32 %v27, %v154
    %161 = vst [vmem:[#allocation2] sm:$0xff] %v157
    %162 = vst [vmem:[#allocation2 + $0x8] sm:$0xff] %v158
    %163 = vst [vmem:[#allocation2 + $0x10] sm:$0xff] %v159
    %164 = vst [vmem:[#allocation2 + $0x18] sm:$0xff] %v160
    // Predicated region
    $region18: #{decoder_forward.11} parent=1 // pred_check
      %p165 = pneg %p16
    $region19: #{decoder_forward.11} parent=1 // pred_check_branch
      %167 = sbr.rel (%p165) target = $region21
    $region20: #{decoder_forward.11} parent=1 // pred_region
      %v168 = vld [vmem:[#allocation2] sm:$0xff]
      %v169 = vld [vmem:[#allocation2 + $0x8] sm:$0xff]
      %v170 = vld [vmem:[#allocation2 + $0x10] sm:$0xff]
      %v171 = vld [vmem:[#allocation2 + $0x18] sm:$0xff]
      %v172 = vld [vmem:[%s2] sm:$0x1]
      %v174 = vlaneseq
      %v175 = vshrl.u32 %v174, 7
      %v176 = vsub.s32 0, %v175
      %v177 = vrot.slane %v172, %v176
      %v179 = vadd.f32 %v168, %v177
      %v180 = vadd.f32 %v169, %v177
      %v181 = vadd.f32 %v170, %v177
      %v182 = vadd.f32 %v171, %v177
      %183 = vst [vmem:[#allocation3] sm:$0xff] %v179
      %184 = vst [vmem:[#allocation3 + $0x8] sm:$0xff] %v180
      %185 = vst [vmem:[#allocation3 + $0x10] sm:$0xff] %v181
      %186 = vst [vmem:[#allocation3 + $0x18] sm:$0xff] %v182
    $region21: #{decoder_forward.11} parent=1 // pred_fallthru
      _
    // Predicated region
    $region22: #{decoder_forward.11} parent=1 // pred_check
      _
    $region23: #{decoder_forward.11} parent=1 // pred_check_branch
      %188 = sbr.rel (0) target = $region25
    $region24: #{decoder_forward.11} parent=1 // pred_region
      %s190 = ssub.s32 512, 512
      %191 = vsyncadd [#allocation4], %s190
      %s192 = sshll.u32 [#allocation3], 4
      %s193 = int_to_ptr.vmem [resolvable:$true] %s192
      %198 = dma.vmem_to_hbm [thread:$0]  %s193, 512, %s3, [#allocation4], 128, 128, 8
    $region25: #{decoder_forward.11} parent=1 // pred_fallthru
      _
    // Predicated region
    $region26: #{decoder_forward.11} parent=1 // pred_check
      _
    $region27: #{decoder_forward.11} parent=1 // pred_check_branch
      %200 = sbr.rel (0) target = $region29
    $region28: #{decoder_forward.11} parent=1 // pred_region
      %201 = dma.done [#allocation4], 512
    $region29: #{decoder_forward.11} parent=1 // pred_fallthru
      _
    %202 = vsyncpa [#allocation4], 1

</llo_original>
